<compile_context>
chip_gen: v7x
topology: tpu7x:2x2x1
jax: 0.10.0
libtpu: 0.0.40
codegen_flags: <defaults>
</compile_context>

<pallas_src>
import types

import jax
import jax.numpy as jnp
from jax.experimental import pallas as pl
from jax.experimental.pallas import tpu as pltpu

_BIG = 1e30  # sentinel for excluded "closest negative" candidates (squared)


def _make_kernel(tq, tk, D, b_real, b_pad):
    # PyTorch spec: sqrt((diffs**2 + 1e-16).sum(-1)) == sqrt(sum(diffs**2) + D*1e-16)
    eps = float(D) * 1e-16
    need_valid = (b_pad != b_real)

    def kernel(x_q_ref, xt_k_ref, xsq_k_ref, wv_ref, w_ref, b_ref, alpha_ref,
               lab_q_ref, lab_k_ref, idx_q_ref, idx_k_ref,
               diff_ref, sem_ref,
               neg2sem_sc, semsq_sc, fp_sc, cn_sc):
        ki = pl.program_id(1)
        nk = pl.num_programs(1)

        # ---- per-query-tile init (once per sweep over key tiles) ----------
        @pl.when(ki == 0)
        def _init():
            # sem_org = fc(wv) = wv @ W^T + b   (small, f32 MXU, once per qi)
            sem_org = jnp.dot(wv_ref[...], w_ref[...],
                              preferred_element_type=jnp.float32) + b_ref[...]
            a = alpha_ref[...]
            sem = a * sem_org + (1.0 - a) * x_q_ref[...]
            sem_ref[...] = sem                                   # f32 output
            # fold the -2 of the Gram form into the resident bf16 operand
            neg2sem_sc[...] = (-2.0 * sem).astype(jnp.bfloat16)
            semsq_sc[...] = jnp.sum(sem * sem, axis=1, keepdims=True)
            fp_sc[...] = jnp.full_like(fp_sc, -jnp.inf)          # no-positive sentinel
            cn_sc[...] = jnp.full_like(cn_sc, _BIG)

        # ---- streamed key tile: squared pairwise euclidean on the MXU ------
        gram2 = jnp.dot(neg2sem_sc[...], xt_k_ref[...],
                        preferred_element_type=jnp.float32)      # (tq, tk) = -2*sem.x
        d2 = semsq_sc[...] + xsq_k_ref[...] + gram2              # squared distance

        same = lab_q_ref[...] == lab_k_ref[...]                  # (tq, tk)
        positive = jnp.logical_and(same, idx_q_ref[...] != idx_k_ref[...])
        neg_excl = same
        if need_valid:
            invalid = idx_k_ref[...] >= b_real                   # padded key cols
            positive = jnp.logical_and(positive, jnp.logical_not(invalid))
            neg_excl = jnp.logical_or(neg_excl, invalid)

        fp_tile = jnp.max(jnp.where(positive, d2, -jnp.inf), axis=1, keepdims=True)
        cn_tile = jnp.min(jnp.where(neg_excl, _BIG, d2), axis=1, keepdims=True)
        fp_sc[...] = jnp.maximum(fp_sc[...], fp_tile)
        cn_sc[...] = jnp.minimum(cn_sc[...], cn_tile)

        # ---- finalize: sqrt only on (tq,1) accumulators, lane-dense diff ----
        @pl.when(ki == nk - 1)
        def _fin():
            fp_sq = fp_sc[...]
            cn_sq = cn_sc[...]
            # exact 0 for rows with no positives (matches max(dists*0) == 0)
            fp = jnp.where(fp_sq == -jnp.inf, 0.0,
                           jnp.sqrt(jnp.maximum(fp_sq, 0.0) + eps))
            cn = jnp.sqrt(jnp.maximum(cn_sq, 0.0) + eps)
            diff_ref[...] = jax.nn.softplus(fp - cn).T           # (1, tq)

    return kernel


def _round_up(n, m):
    return ((n + m - 1) // m) * m


def _largest_tile(Bp, cap):
    """Largest multiple of 128 that is <= cap and divides Bp (Bp % 128 == 0)."""
    t = max(128, (min(Bp, cap) // 128) * 128)
    while Bp % t != 0:
        t -= 128
    return t


def _pick_tiles(B):
    Bp = _round_up(max(B, 1), 128)
    tk = _largest_tile(Bp, 2048)
    tq_cap = 512
    if Bp >= 256:
        # prefer nq >= 2 so the parallel query axis feeds both v7x TensorCores
        tq_cap = min(tq_cap, Bp // 2)
    tq = _largest_tile(Bp, tq_cap)
    return Bp, tq, tk


def semantic_batchhard_pallas(x, wv, fc_w_t, fc_b_row, alpha, label):
    """Fused forward pass.

    x:        (B, num_hashing) f32
    wv:       (B, wv_size)     f32
    fc_w_t:   (wv_size, num_hashing) f32  (pre-transposed Linear weight)
    fc_b_row: (1, num_hashing) f32
    alpha:    (B, 1)           f32  (the torch.rand(B,1) mixing coefficient)
    label:    (B,)             int32
    returns (diff: (B,), sem: (B, num_hashing))
    """
    B, D = x.shape
    W = wv.shape[1]
    Bp, tq, tk = _pick_tiles(B)
    nq, nk = Bp // tq, Bp // tk
    pad = Bp - B

    # Wrapper-side layout / padding prep (keeps in-kernel ops VPU/MXU-only).
    if pad:
        x_p = jnp.pad(x, ((0, pad), (0, 0)))
        wv_p = jnp.pad(wv, ((0, pad), (0, 0)))
        alpha_p = jnp.pad(alpha, ((0, pad), (0, 0)))
        lab_p = jnp.pad(label.astype(jnp.int32), ((0, pad),), constant_values=-1)
    else:
        x_p, wv_p, alpha_p, lab_p = x, wv, alpha, label.astype(jnp.int32)

    x_t = x_p.T.astype(jnp.bfloat16)                    # (D, Bp) bf16 Gram operand
    x_sq = jnp.sum(x_p * x_p, axis=1).reshape(1, Bp)    # (1, Bp) f32 norms
    lab_q = lab_p.reshape(Bp, 1)
    lab_k = lab_p.reshape(1, Bp)
    idx = jnp.arange(Bp, dtype=jnp.int32)
    idx_q = idx.reshape(Bp, 1)
    idx_k = idx.reshape(1, Bp)

    kernel = _make_kernel(tq, tk, D, B, Bp)

    flops = 2 * Bp * W * D + 2 * Bp * Bp * D + 10 * Bp * Bp
    bytes_accessed = (4 * Bp * D        # x (f32)
                      + 2 * Bp * D      # x.T (bf16)
                      + 4 * Bp          # ||x||^2
                      + 4 * Bp * W      # wv
                      + 4 * W * D       # fc weight
                      + 4 * D           # fc bias
                      + 4 * Bp          # alpha
                      + 4 * 4 * Bp      # labels + indices (q/k)
                      + 4 * Bp          # diff out
                      + 4 * Bp * D)     # sem out
    cost = pl.CostEstimate(flops=flops,
                           transcendentals=3 * Bp,
                           bytes_accessed=bytes_accessed)

    # Large-tile (tq,tk) f32 intermediates need scoped VMEM above the default;
    # 48 MiB fits every generation (v7x physical = 64 MiB per TC).
    vmem_limit = int(min(48 * 1024 * 1024,
                         max(16 * 1024 * 1024, 16 * tq * tk * 4)))

    grid_spec = pltpu.PrefetchScalarGridSpec(
        num_scalar_prefetch=0,
        grid=(nq, nk),
        in_specs=[
            pl.BlockSpec((tq, D), lambda qi, ki: (qi, 0)),   # x (query rows) f32
            pl.BlockSpec((D, tk), lambda qi, ki: (0, ki)),   # x.T (key cols) bf16
            pl.BlockSpec((1, tk), lambda qi, ki: (0, ki)),   # ||x||^2 (keys)
            pl.BlockSpec((tq, W), lambda qi, ki: (qi, 0)),   # wv
            pl.BlockSpec((W, D), lambda qi, ki: (0, 0)),     # fc weight^T
            pl.BlockSpec((1, D), lambda qi, ki: (0, 0)),     # fc bias
            pl.BlockSpec((tq, 1), lambda qi, ki: (qi, 0)),   # alpha
            pl.BlockSpec((tq, 1), lambda qi, ki: (qi, 0)),   # label (rows)
            pl.BlockSpec((1, tk), lambda qi, ki: (0, ki)),   # label (cols)
            pl.BlockSpec((tq, 1), lambda qi, ki: (qi, 0)),   # global idx (rows)
            pl.BlockSpec((1, tk), lambda qi, ki: (0, ki)),   # global idx (cols)
        ],
        out_specs=(
            pl.BlockSpec((1, tq), lambda qi, ki: (0, qi)),   # diff (lane-dense)
            pl.BlockSpec((tq, D), lambda qi, ki: (qi, 0)),   # sem
        ),
        scratch_shapes=[
            pltpu.VMEM((tq, D), jnp.bfloat16),  # -2*sem (resident Gram operand)
            pltpu.VMEM((tq, 1), jnp.float32),   # ||sem||^2
            pltpu.VMEM((tq, 1), jnp.float32),   # running furthest positive (sq)
            pltpu.VMEM((tq, 1), jnp.float32),   # running closest negative (sq)
        ],
    )

    diff2d, sem = pl.pallas_call(
        kernel,
        out_shape=(jax.ShapeDtypeStruct((1, Bp), jnp.float32),
                   jax.ShapeDtypeStruct((Bp, D), jnp.float32)),
        grid_spec=grid_spec,
        compiler_params=pltpu.CompilerParams(
            dimension_semantics=("parallel", "arbitrary"),
            vmem_limit_bytes=vmem_limit),
        cost_estimate=cost,
    )(x_p, x_t, x_sq, wv_p, fc_w_t, fc_b_row, alpha_p, lab_q, lab_k, idx_q, idx_k)
    return diff2d[0, :B], sem[:B]


class XBM2:
    """Functional (plain-JAX) memory bank. Only glue / state bookkeeping."""

    def __init__(self, K, feat_dim):
        self.K = K
        self.feats = jnp.zeros((K, feat_dim), jnp.float32)
        self.sems = jnp.zeros((K, feat_dim), jnp.float32)
        self.targets = -1 * jnp.ones((K,), jnp.int32)
        self.ptr = 0

    def enqueue_dequeue(self, feats, sems, targets):
        # TODO(synk): Python-side pointer state; not jit/scan-safe by design.
        q = targets.shape[0]
        if self.ptr + q > self.K:
            start = self.K - q
            self.ptr = 0
        else:
            start = self.ptr
            self.ptr += q
        self.feats = jax.lax.dynamic_update_slice(self.feats, feats, (start, 0))
        self.sems = jax.lax.dynamic_update_slice(self.sems, sems, (start, 0))
        self.targets = jax.lax.dynamic_update_slice(self.targets,
                                                    targets.astype(jnp.int32),
                                                    (start,))


class SemanticBatchHardXBM2:
    def __init__(self, opt, key):
        self.opt = opt
        kw, kb = jax.random.split(key)
        bound = 1.0 / (opt.wv_size ** 0.5)
        # deterministic init mimicking nn.Linear's uniform(-1/sqrt(fan_in), ...)
        self.fc_w = jax.random.uniform(kw, (opt.num_hashing, opt.wv_size),
                                       jnp.float32, -bound, bound)
        self.fc_b = jax.random.uniform(kb, (opt.num_hashing,),
                                       jnp.float32, -bound, bound)
        # cache kernel-friendly layouts once (no per-step transpose op)
        self.fc_w_t = self.fc_w.T                       # (wv_size, num_hashing)
        self.fc_b_row = self.fc_b.reshape(1, opt.num_hashing)
        self.xbm = XBM2(K=opt.K, feat_dim=opt.num_hashing)

    def forward(self, x, wv, label, alpha, iter=0):
        diff, sem = semantic_batchhard_pallas(x, wv, self.fc_w_t,
                                              self.fc_b_row, alpha, label)
        # TODO(synk): the iter > 1000 branch compares against the (variable-
        # length) XBM bank; not implemented in the kernel.
        self.xbm.enqueue_dequeue(x, sem, label)
        return diff, sem


def _reference(x, wv, fc_w, fc_b, alpha, label):
    """Plain-JAX mirror of the PyTorch spec (with alpha given)."""
    B = x.shape[0]
    sem_org = wv @ fc_w.T + fc_b
    sem = alpha * sem_org + (1.0 - alpha) * x
    diffs = sem[:, None, :] - x[None, :, :]
    dists = jnp.sqrt(jnp.sum(diffs * diffs + 1e-16, axis=-1))
    same = label[:, None] == label[None, :]
    pmask = jnp.logical_xor(same, jnp.eye(B, dtype=bool))
    fp = jnp.max(dists * pmask.astype(jnp.float32), axis=1)
    cn = jnp.min(dists + 1e8 * same.astype(jnp.float32), axis=1)
    return jax.nn.softplus(fp - cn), sem


if __name__ == "__main__":
    opt = types.SimpleNamespace(wv_size=32, num_hashing=16, K=64)
    B = 8

    key = jax.random.PRNGKey(0)
    k_param, k_x, k_wv, k_lab, k_alpha = jax.random.split(key, 5)

    model = SemanticBatchHardXBM2(opt, k_param)

    x = jax.random.normal(k_x, (B, opt.num_hashing), jnp.float32)
    wv = jax.random.normal(k_wv, (B, opt.wv_size), jnp.float32)
    label = jax.random.randint(k_lab, (B,), 0, 4, jnp.int32)
    alpha = jax.random.uniform(k_alpha, (B, 1), jnp.float32)  # torch.rand(B,1)

    diff, sem = model.forward(x, wv, label, alpha, iter=0)
    jax.block_until_ready((diff, sem))

    assert diff.shape == (B,) and sem.shape == (B, opt.num_hashing)

    # loose tolerance: kernel uses the Gram-matrix distance form with bf16
    # MXU operands (f32 accumulation / norms)
    diff_ref, sem_ref = _reference(x, wv, model.fc_w, model.fc_b, alpha, label)
    assert jnp.allclose(sem, sem_ref, rtol=5e-2, atol=5e-2)
    assert jnp.allclose(diff, diff_ref, rtol=5e-2, atol=5e-2)

    print("KERNEL_OK")
</pallas_src>

<mosaic_0001>
module attributes {stable_mosaic.version = 11 : i64} {
  func.func @kernel(%arg0: i32, %arg1: i32, %arg2: memref<128x16xf32, #tpu.memory_space<vmem>>, %arg3: memref<16x128xbf16, #tpu.memory_space<vmem>>, %arg4: memref<1x128xf32, #tpu.memory_space<vmem>>, %arg5: memref<128x32xf32, #tpu.memory_space<vmem>>, %arg6: memref<32x16xf32, #tpu.memory_space<vmem>>, %arg7: memref<1x16xf32, #tpu.memory_space<vmem>>, %arg8: memref<128x1xf32, #tpu.memory_space<vmem>>, %arg9: memref<128x1xi32, #tpu.memory_space<vmem>>, %arg10: memref<1x128xi32, #tpu.memory_space<vmem>>, %arg11: memref<128x1xi32, #tpu.memory_space<vmem>>, %arg12: memref<1x128xi32, #tpu.memory_space<vmem>>, %arg13: memref<1x128xf32, #tpu.memory_space<vmem>>, %arg14: memref<128x16xf32, #tpu.memory_space<vmem>>, %arg15: memref<128x16xbf16, #tpu.memory_space<vmem>>, %arg16: memref<128x1xf32, #tpu.memory_space<vmem>>, %arg17: memref<128x1xf32, #tpu.memory_space<vmem>>, %arg18: memref<128x1xf32, #tpu.memory_space<vmem>>) attributes {dimension_semantics = [#tpu.dimension_semantics<parallel>, #tpu.dimension_semantics<arbitrary>], iteration_bounds = array<i64: 1, 1>, scalar_prefetch = 0 : i64, scratch_operands = 4 : i64, tpu.core_type = #tpu.core_type<tc>, window_params = [{transform_indices = @transform_0, window_bounds = array<i64: 128, 16>}, {transform_indices = @transform_1, window_bounds = array<i64: 16, 128>}, {transform_indices = @transform_2, window_bounds = array<i64: 1, 128>}, {transform_indices = @transform_3, window_bounds = array<i64: 128, 32>}, {pipeline_mode = #tpu.pipeline_mode<synchronous>, transform_indices = @transform_4, window_bounds = array<i64: 32, 16>}, {pipeline_mode = #tpu.pipeline_mode<synchronous>, transform_indices = @transform_5, window_bounds = array<i64: 1, 16>}, {transform_indices = @transform_6, window_bounds = array<i64: 128, 1>}, {transform_indices = @transform_7, window_bounds = array<i64: 128, 1>}, {transform_indices = @transform_8, window_bounds = array<i64: 1, 128>}, {transform_indices = @transform_9, window_bounds = array<i64: 128, 1>}, {transform_indices = @transform_10, window_bounds = array<i64: 1, 128>}, {transform_indices = @transform_11, window_bounds = array<i64: 1, 128>}, {transform_indices = @transform_12, window_bounds = array<i64: 128, 16>}]} {
    %c0_i32 = arith.constant 0 : i32
    %0 = arith.cmpi eq, %arg1, %c0_i32 : i32
    %1 = arith.extui %0 : i1 to i32
    %c0_i32_0 = arith.constant 0 : i32
    %2 = arith.cmpi ne, %1, %c0_i32_0 : i32
    scf.if %2 {
      %c0_33 = arith.constant 0 : index
      %c0_34 = arith.constant 0 : index
      %48 = vector.load %arg5[%c0_33, %c0_34] : memref<128x32xf32, #tpu.memory_space<vmem>>, vector<128x32xf32>
      %c0_35 = arith.constant 0 : index
      %c0_36 = arith.constant 0 : index
      %49 = vector.load %arg6[%c0_35, %c0_36] : memref<32x16xf32, #tpu.memory_space<vmem>>, vector<32x16xf32>
      %cst_37 = arith.constant dense<0.000000e+00> : vector<128x16xf32>
      %50 = tpu.matmul %48, %49, %cst_37 {dimension_numbers = #tpu.dot_dimension_numbers<[1], [0], [0], [1], [0, 0, 1, 1], [], []>} : vector<128x32xf32>, vector<32x16xf32>, vector<128x16xf32> -> vector<128x16xf32>
      %c0_38 = arith.constant 0 : index
      %c0_39 = arith.constant 0 : index
      %51 = vector.load %arg7[%c0_38, %c0_39] : memref<1x16xf32, #tpu.memory_space<vmem>>, vector<1x16xf32>
      %52 = vector.broadcast %51 : vector<1x16xf32> to vector<128x16xf32>
      %53 = arith.addf %50, %52 : vector<128x16xf32>
      %c0_40 = arith.constant 0 : index
      %c0_41 = arith.constant 0 : index
      %54 = vector.load %arg8[%c0_40, %c0_41] : memref<128x1xf32, #tpu.memory_space<vmem>>, vector<128x1xf32>
      %55 = vector.broadcast %54 : vector<128x1xf32> to vector<128x16xf32>
      %56 = arith.mulf %55, %53 : vector<128x16xf32>
      %cst_42 = arith.constant 1.000000e+00 : f32
      %57 = vector.broadcast %cst_42 : f32 to vector<128x1xf32>
      %58 = arith.subf %57, %54 : vector<128x1xf32>
      %c0_43 = arith.constant 0 : index
      %c0_44 = arith.constant 0 : index
      %59 = vector.load %arg2[%c0_43, %c0_44] : memref<128x16xf32, #tpu.memory_space<vmem>>, vector<128x16xf32>
      %60 = vector.broadcast %58 : vector<128x1xf32> to vector<128x16xf32>
      %61 = arith.mulf %60, %59 : vector<128x16xf32>
      %62 = arith.addf %56, %61 : vector<128x16xf32>
      %c0_45 = arith.constant 0 : index
      %c0_46 = arith.constant 0 : index
      %63 = vector.load %arg14[%c0_45, %c0_46] : memref<128x16xf32, #tpu.memory_space<vmem>>, vector<128x16xf32>
      tpu.vector_store %arg14[%c0_45, %c0_46], %62 {strides = array<i32>} : memref<128x16xf32, #tpu.memory_space<vmem>>, vector<128x16xf32>,
      %cst_47 = arith.constant -2.000000e+00 : f32
      %64 = vector.broadcast %cst_47 : f32 to vector<128x16xf32>
      %65 = arith.mulf %64, %62 : vector<128x16xf32>
      %66 = arith.truncf %65 : vector<128x16xf32> to vector<128x16xbf16>
      %c0_48 = arith.constant 0 : index
      %c0_49 = arith.constant 0 : index
      %67 = vector.load %arg15[%c0_48, %c0_49] : memref<128x16xbf16, #tpu.memory_space<vmem>>, vector<128x16xbf16>
      tpu.vector_store %arg15[%c0_48, %c0_49], %66 {strides = array<i32>} : memref<128x16xbf16, #tpu.memory_space<vmem>>, vector<128x16xbf16>,
      %68 = arith.mulf %62, %62 : vector<128x16xf32>
      %cst_50 = arith.constant dense<0.000000e+00> : vector<128xf32>
      %69 = vector.multi_reduction <add>, %68, %cst_50 [1] : vector<128x16xf32> to vector<128xf32>
      %70 = vector.shape_cast %69 : vector<128xf32> to vector<128x1xf32>
      %c0_51 = arith.constant 0 : index
      %c0_52 = arith.constant 0 : index
      %71 = vector.load %arg16[%c0_51, %c0_52] : memref<128x1xf32, #tpu.memory_space<vmem>>, vector<128x1xf32>
      tpu.vector_store %arg16[%c0_51, %c0_52], %70 {strides = array<i32>} : memref<128x1xf32, #tpu.memory_space<vmem>>, vector<128x1xf32>,
      %cst_53 = arith.constant 0xFF800000 : f32
      %72 = vector.broadcast %cst_53 : f32 to vector<128x1xf32>
      %c0_54 = arith.constant 0 : index
      %c0_55 = arith.constant 0 : index
      %73 = vector.load %arg17[%c0_54, %c0_55] : memref<128x1xf32, #tpu.memory_space<vmem>>, vector<128x1xf32>
      tpu.vector_store %arg17[%c0_54, %c0_55], %72 {strides = array<i32>} : memref<128x1xf32, #tpu.memory_space<vmem>>, vector<128x1xf32>,
      %cst_56 = arith.constant 1.000000e+30 : f32
      %74 = vector.broadcast %cst_56 : f32 to vector<128x1xf32>
      %c0_57 = arith.constant 0 : index
      %c0_58 = arith.constant 0 : index
      %75 = vector.load %arg18[%c0_57, %c0_58] : memref<128x1xf32, #tpu.memory_space<vmem>>, vector<128x1xf32>
      tpu.vector_store %arg18[%c0_57, %c0_58], %74 {strides = array<i32>} : memref<128x1xf32, #tpu.memory_space<vmem>>, vector<128x1xf32>,
    } else {
    }
    %c0 = arith.constant 0 : index
    %c0_1 = arith.constant 0 : index
    %3 = vector.load %arg15[%c0, %c0_1] : memref<128x16xbf16, #tpu.memory_space<vmem>>, vector<128x16xbf16>
    %c0_2 = arith.constant 0 : index
    %c0_3 = arith.constant 0 : index
    %4 = vector.load %arg3[%c0_2, %c0_3] : memref<16x128xbf16, #tpu.memory_space<vmem>>, vector<16x128xbf16>
    %cst = arith.constant dense<0.000000e+00> : vector<128x128xf32>
    %5 = tpu.matmul %3, %4, %cst {dimension_numbers = #tpu.dot_dimension_numbers<[1], [0], [0], [1], [0, 0, 1, 1], [], []>} : vector<128x16xbf16>, vector<16x128xbf16>, vector<128x128xf32> -> vector<128x128xf32>
    %c0_4 = arith.constant 0 : index
    %c0_5 = arith.constant 0 : index
    %6 = vector.load %arg16[%c0_4, %c0_5] : memref<128x1xf32, #tpu.memory_space<vmem>>, vector<128x1xf32>
    %c0_6 = arith.constant 0 : index
    %c0_7 = arith.constant 0 : index
    %7 = vector.load %arg4[%c0_6, %c0_7] : memref<1x128xf32, #tpu.memory_space<vmem>>, vector<1x128xf32>
    %8 = vector.broadcast %6 : vector<128x1xf32> to vector<128x128xf32>
    %9 = vector.broadcast %7 : vector<1x128xf32> to vector<128x128xf32>
    %10 = arith.addf %8, %9 : vector<128x128xf32>
    %11 = arith.addf %10, %5 : vector<128x128xf32>
    %c0_8 = arith.constant 0 : index
    %c0_9 = arith.constant 0 : index
    %12 = vector.load %arg9[%c0_8, %c0_9] : memref<128x1xi32, #tpu.memory_space<vmem>>, vector<128x1xi32>
    %c0_10 = arith.constant 0 : index
    %c0_11 = arith.constant 0 : index
    %13 = vector.load %arg10[%c0_10, %c0_11] : memref<1x128xi32, #tpu.memory_space<vmem>>, vector<1x128xi32>
    %14 = vector.broadcast %12 : vector<128x1xi32> to vector<128x128xi32>
    %15 = vector.broadcast %13 : vector<1x128xi32> to vector<128x128xi32>
    %16 = arith.cmpi eq, %14, %15 : vector<128x128xi32>
    %c0_12 = arith.constant 0 : index
    %c0_13 = arith.constant 0 : index
    %17 = vector.load %arg11[%c0_12, %c0_13] : memref<128x1xi32, #tpu.memory_space<vmem>>, vector<128x1xi32>
    %c0_14 = arith.constant 0 : index
    %c0_15 = arith.constant 0 : index
    %18 = vector.load %arg12[%c0_14, %c0_15] : memref<1x128xi32, #tpu.memory_space<vmem>>, vector<1x128xi32>
    %19 = vector.broadcast %17 : vector<128x1xi32> to vector<128x128xi32>
    %20 = vector.broadcast %18 : vector<1x128xi32> to vector<128x128xi32>
    %21 = arith.cmpi ne, %19, %20 : vector<128x128xi32>
    %22 = arith.andi %16, %21 : vector<128x128xi1>
    %c0_16 = arith.constant 0 : index
    %c0_17 = arith.constant 0 : index
    %23 = vector.load %arg12[%c0_16, %c0_17] : memref<1x128xi32, #tpu.memory_space<vmem>>, vector<1x128xi32>
    %c8_i32 = arith.constant 8 : i32
    %24 = vector.broadcast %c8_i32 : i32 to vector<1x128xi32>
    %25 = arith.cmpi sge, %23, %24 : vector<1x128xi32>
    %cst_18 = arith.constant dense<true> : vector<1x128xi1>
    %26 = arith.xori %25, %cst_18 : vector<1x128xi1>
    %27 = vector.broadcast %26 : vector<1x128xi1> to vector<128x128xi1>
    %28 = arith.andi %22, %27 : vector<128x128xi1>
    %29 = vector.broadcast %25 : vector<1x128xi1> to vector<128x128xi1>
    %30 = arith.ori %16, %29 : vector<128x128xi1>
    %cst_19 = arith.constant 0xFF800000 : f32
    %31 = vector.broadcast %cst_19 : f32 to vector<128x128xf32>
    %32 = arith.select %28, %11, %31 : vector<128x128xi1>, vector<128x128xf32>
    %cst_20 = arith.constant dense<0xFF800000> : vector<128xf32>
    %33 = vector.multi_reduction <maximumf>, %32, %cst_20 [1] : vector<128x128xf32> to vector<128xf32>
    %34 = vector.shape_cast %33 : vector<128xf32> to vector<128x1xf32>
    %cst_21 = arith.constant 1.000000e+30 : f32
    %35 = vector.broadcast %cst_21 : f32 to vector<128x128xf32>
    %36 = arith.select %30, %35, %11 : vector<128x128xi1>, vector<128x128xf32>
    %cst_22 = arith.constant dense<0x7F800000> : vector<128xf32>
    %37 = vector.multi_reduction <minimumf>, %36, %cst_22 [1] : vector<128x128xf32> to vector<128xf32>
    %38 = vector.shape_cast %37 : vector<128xf32> to vector<128x1xf32>
    %c0_23 = arith.constant 0 : index
    %c0_24 = arith.constant 0 : index
    %39 = vector.load %arg17[%c0_23, %c0_24] : memref<128x1xf32, #tpu.memory_space<vmem>>, vector<128x1xf32>
    %40 = arith.maximumf %39, %34 : vector<128x1xf32>
    %c0_25 = arith.constant 0 : index
    %c0_26 = arith.constant 0 : index
    %41 = vector.load %arg17[%c0_25, %c0_26] : memref<128x1xf32, #tpu.memory_space<vmem>>, vector<128x1xf32>
    tpu.vector_store %arg17[%c0_25, %c0_26], %40 {strides = array<i32>} : memref<128x1xf32, #tpu.memory_space<vmem>>, vector<128x1xf32>,
    %c0_27 = arith.constant 0 : index
    %c0_28 = arith.constant 0 : index
    %42 = vector.load %arg18[%c0_27, %c0_28] : memref<128x1xf32, #tpu.memory_space<vmem>>, vector<128x1xf32>
    %43 = arith.minimumf %42, %38 : vector<128x1xf32>
    %c0_29 = arith.constant 0 : index
    %c0_30 = arith.constant 0 : index
    %44 = vector.load %arg18[%c0_29, %c0_30] : memref<128x1xf32, #tpu.memory_space<vmem>>, vector<128x1xf32>
    tpu.vector_store %arg18[%c0_29, %c0_30], %43 {strides = array<i32>} : memref<128x1xf32, #tpu.memory_space<vmem>>, vector<128x1xf32>,
    %c0_i32_31 = arith.constant 0 : i32
    %45 = arith.cmpi eq, %arg1, %c0_i32_31 : i32
    %46 = arith.extui %45 : i1 to i32
    %c0_i32_32 = arith.constant 0 : i32
    %47 = arith.cmpi ne, %46, %c0_i32_32 : i32
    scf.if %47 {
      %c0_33 = arith.constant 0 : index
      %c0_34 = arith.constant 0 : index
      %48 = vector.load %arg17[%c0_33, %c0_34] : memref<128x1xf32, #tpu.memory_space<vmem>>, vector<128x1xf32>
      %c0_35 = arith.constant 0 : index
      %c0_36 = arith.constant 0 : index
      %49 = vector.load %arg18[%c0_35, %c0_36] : memref<128x1xf32, #tpu.memory_space<vmem>>, vector<128x1xf32>
      %cst_37 = arith.constant 0xFF800000 : f32
      %50 = vector.broadcast %cst_37 : f32 to vector<128x1xf32>
      %51 = arith.cmpf oeq, %48, %50 : vector<128x1xf32>
      %cst_38 = arith.constant 0.000000e+00 : f32
      %52 = vector.broadcast %cst_38 : f32 to vector<128x1xf32>
      %53 = arith.maximumf %48, %52 : vector<128x1xf32>
      %cst_39 = arith.constant 1.600000e-15 : f32
      %54 = vector.broadcast %cst_39 : f32 to vector<128x1xf32>
      %55 = arith.addf %53, %54 : vector<128x1xf32>
      %56 = math.sqrt %55 : vector<128x1xf32>
      %cst_40 = arith.constant 0.000000e+00 : f32
      %57 = vector.broadcast %cst_40 : f32 to vector<128x1xf32>
      %58 = arith.select %51, %57, %56 : vector<128x1xi1>, vector<128x1xf32>
      %cst_41 = arith.constant 0.000000e+00 : f32
      %59 = vector.broadcast %cst_41 : f32 to vector<128x1xf32>
      %60 = arith.maximumf %49, %59 : vector<128x1xf32>
      %cst_42 = arith.constant 1.600000e-15 : f32
      %61 = vector.broadcast %cst_42 : f32 to vector<128x1xf32>
      %62 = arith.addf %60, %61 : vector<128x1xf32>
      %63 = math.sqrt %62 : vector<128x1xf32>
      %64 = arith.subf %58, %63 : vector<128x1xf32>
      %cst_43 = arith.constant 0.000000e+00 : f32
      %65 = vector.broadcast %cst_43 : f32 to vector<128x1xf32>
      %66 = arith.maximumf %64, %65 : vector<128x1xf32>
      %67 = vector.broadcast %cst_43 : f32 to vector<128x1xf32>
      %68 = arith.subf %64, %67 : vector<128x1xf32>
      %69 = arith.cmpf one, %68, %68 : vector<128x1xf32>
      %70 = vector.broadcast %cst_43 : f32 to vector<128x1xf32>
      %71 = arith.addf %64, %70 : vector<128x1xf32>
      %72 = math.absf %68 : vector<128x1xf32>
      %cst_44 = arith.constant 0.000000e+00 : f32
      %73 = vector.broadcast %cst_44 : f32 to vector<128x1xf32>
      %74 = arith.subf %73, %72 : vector<128x1xf32>
      %75 = math.exp %74 : vector<128x1xf32>
      %76 = math.log1p %75 : vector<128x1xf32>
      %77 = arith.addf %66, %76 : vector<128x1xf32>
      %78 = arith.select %69, %71, %77 : vector<128x1xi1>, vector<128x1xf32>
      %79 = tpu.transpose %78, [1, 0] : vector<128x1xf32> -> vector<1x128xf32>
      %c0_45 = arith.constant 0 : index
      %c0_46 = arith.constant 0 : index
      %80 = vector.load %arg13[%c0_45, %c0_46] : memref<1x128xf32, #tpu.memory_space<vmem>>, vector<1x128xf32>
      tpu.vector_store %arg13[%c0_45, %c0_46], %79 {strides = array<i32>} : memref<1x128xf32, #tpu.memory_space<vmem>>, vector<1x128xf32>,
    } else {
    }
    return
  }
  func.func @transform_0(%arg0: i32, %arg1: i32) -> (i32, i32) {
    %c0_i32 = arith.constant 0 : i32
    %c0_i32_0 = arith.constant 0 : i32
    return %arg0, %c0_i32 : i32, i32
  }
  func.func @transform_1(%arg0: i32, %arg1: i32) -> (i32, i32) {
    %c0_i32 = arith.constant 0 : i32
    %c0_i32_0 = arith.constant 0 : i32
    return %c0_i32, %arg1 : i32, i32
  }
  func.func @transform_2(%arg0: i32, %arg1: i32) -> (i32, i32) {
    %c0_i32 = arith.constant 0 : i32
    %c0_i32_0 = arith.constant 0 : i32
    return %c0_i32, %arg1 : i32, i32
  }
  func.func @transform_3(%arg0: i32, %arg1: i32) -> (i32, i32) {
    %c0_i32 = arith.constant 0 : i32
    %c0_i32_0 = arith.constant 0 : i32
    return %arg0, %c0_i32 : i32, i32
  }
  func.func @transform_4(%arg0: i32, %arg1: i32) -> (i32, i32) {
    %c0_i32 = arith.constant 0 : i32
    %c0_i32_0 = arith.constant 0 : i32
    %c0_i32_1 = arith.constant 0 : i32
    return %c0_i32, %c0_i32_0 : i32, i32
  }
  func.func @transform_5(%arg0: i32, %arg1: i32) -> (i32, i32) {
    %c0_i32 = arith.constant 0 : i32
    %c0_i32_0 = arith.constant 0 : i32
    %c0_i32_1 = arith.constant 0 : i32
    return %c0_i32, %c0_i32_0 : i32, i32
  }
  func.func @transform_6(%arg0: i32, %arg1: i32) -> (i32, i32) {
    %c0_i32 = arith.constant 0 : i32
    %c0_i32_0 = arith.constant 0 : i32
    return %arg0, %c0_i32 : i32, i32
  }
  func.func @transform_7(%arg0: i32, %arg1: i32) -> (i32, i32) {
    %c0_i32 = arith.constant 0 : i32
    %c0_i32_0 = arith.constant 0 : i32
    return %arg0, %c0_i32 : i32, i32
  }
  func.func @transform_8(%arg0: i32, %arg1: i32) -> (i32, i32) {
    %c0_i32 = arith.constant 0 : i32
    %c0_i32_0 = arith.constant 0 : i32
    return %c0_i32, %arg1 : i32, i32
  }
  func.func @transform_9(%arg0: i32, %arg1: i32) -> (i32, i32) {
    %c0_i32 = arith.constant 0 : i32
    %c0_i32_0 = arith.constant 0 : i32
    return %arg0, %c0_i32 : i32, i32
  }
  func.func @transform_10(%arg0: i32, %arg1: i32) -> (i32, i32) {
    %c0_i32 = arith.constant 0 : i32
    %c0_i32_0 = arith.constant 0 : i32
    return %c0_i32, %arg1 : i32, i32
  }
  func.func @transform_11(%arg0: i32, %arg1: i32) -> (i32, i32) {
    %c0_i32 = arith.constant 0 : i32
    %c0_i32_0 = arith.constant 0 : i32
    return %c0_i32, %arg0 : i32, i32
  }
  func.func @transform_12(%arg0: i32, %arg1: i32) -> (i32, i32) {
    %c0_i32 = arith.constant 0 : i32
    %c0_i32_0 = arith.constant 0 : i32
    return %arg0, %c0_i32 : i32, i32
  }
}

</mosaic_0001>

<llo_original>
// kernel: tpu_custom_call.1
$region0: #{tpu_custom_call.1}
  #allocation0 [shape = 'u32[]', space=smem, size = 0x4, offset = 0x4, fixed_abs, tag = 'smem constant byte address 0x4 - core index']
  #allocation1 [shape = 'u32[144,128]{1,0:T(1,128)}', space=vmem, size = 0x12000, scoped, tag = 'internal scratch']
  #allocation2 [shape = 'bf16[128,16]{1,0:T(16,128)(2,1)}', space=vmem, size = 0x8000, scoped, tag = 'scratch operand']
  #allocation3 [shape = 'f32[128,1]{1,0:T(8,128)}', space=vmem, size = 0x10000, scoped, tag = 'scratch operand']
  #allocation4 [shape = 'f32[128,1]{1,0:T(8,128)}', space=vmem, size = 0x10000, scoped, tag = 'scratch operand']
  #allocation5 [shape = 'f32[128,1]{1,0:T(8,128)}', space=vmem, size = 0x10000, scoped, tag = 'scratch operand']
  %s0 = inlined_call_operand.vmem [shape: f32[128,16], index: 0, kind: input, shape index: {}]
  %s1 = inlined_call_operand.vmem [shape: bf16[16,128], index: 1, kind: input, shape index: {}]
  %s2 = inlined_call_operand.vmem [shape: f32[1,128], index: 2, kind: input, shape index: {}]
  %s3 = inlined_call_operand.vmem [shape: f32[128,32], index: 3, kind: input, shape index: {}]
  %s4 = inlined_call_operand.vmem [shape: f32[32,16], index: 4, kind: input, shape index: {}]
  %s5 = inlined_call_operand.vmem [shape: f32[1,16], index: 5, kind: input, shape index: {}]
  %s6 = inlined_call_operand.vmem [shape: f32[128,1], index: 6, kind: input, shape index: {}]
  %s7 = inlined_call_operand.vmem [shape: s32[128,1], index: 7, kind: input, shape index: {}]
  %s8 = inlined_call_operand.vmem [shape: s32[1,128], index: 8, kind: input, shape index: {}]
  %s9 = inlined_call_operand.vmem [shape: s32[128,1], index: 9, kind: input, shape index: {}]
  %s10 = inlined_call_operand.vmem [shape: s32[1,128], index: 10, kind: input, shape index: {}]
  %s11 = inlined_call_operand.hbm [shape: f32[1,128], index: 11, kind: output, shape index: {0}]
  %s12 = inlined_call_operand.vmem [shape: f32[128,16], index: 12, kind: output, shape index: {1}]
  %13 = xla_tuple %s11, %s12
  %s14 = sld [smem:[#allocation0]]
  $region70: #{tpu_custom_call.1} parent=0
    _
  %s16 = ssub.s32 1, %s14
  %s17 = scalar_select 0, %s16, %s14
  $region1: #{tpu_custom_call.1} parent=0
    #allocation6 [shape = 'u8[512]{0}', space=vmem, size = 0x400, scoped, tag = 'output window, operand 0, single buffered']
    #allocation7 [shape = 's32[1]{0}', space=sflag, size = 0x4, scoped, tag = 'scoped memory for tpu_custom_call.1']
    %18 = vsyncpa [#allocation7], 0
    // Predicated region
    $region2: #{tpu_custom_call.1} parent=1 // pred_check
      _
    $region3: #{tpu_custom_call.1} parent=1 // pred_check_branch
      %20 = sbr.rel (0) target = $region5
    $region4: #{tpu_custom_call.1} parent=1 // pred_region
      _
    $region5: #{tpu_custom_call.1} parent=1 // pred_fallthru
      _
    // Predicated region
    $region6: #{tpu_custom_call.1} parent=1 // pred_check
      _
    $region7: #{tpu_custom_call.1} parent=1 // pred_check_branch
      %22 = sbr.rel (0) target = $region9
    $region8: #{tpu_custom_call.1} parent=1 // pred_region
      _
    $region9: #{tpu_custom_call.1} parent=1 // pred_fallthru
      _
    // Predicated region
    $region10: #{tpu_custom_call.1} parent=1 // pred_check
      _
    $region11: #{tpu_custom_call.1} parent=1 // pred_check_branch
      %24 = sbr.rel (0) target = $region13
    $region12: #{tpu_custom_call.1} parent=1 // pred_region
      _
    $region13: #{tpu_custom_call.1} parent=1 // pred_fallthru
      _
    // Predicated region
    $region14: #{tpu_custom_call.1} parent=1 // pred_check
      _
    $region15: #{tpu_custom_call.1} parent=1 // pred_check_branch
      %26 = sbr.rel (0) target = $region17
    $region16: #{tpu_custom_call.1} parent=1 // pred_region
      _
    $region17: #{tpu_custom_call.1} parent=1 // pred_fallthru
      _
    // Predicated region
    $region18: #{tpu_custom_call.1} parent=1 // pred_check
      _
    $region19: #{tpu_custom_call.1} parent=1 // pred_check_branch
      %28 = sbr.rel (0) target = $region21
    $region20: #{tpu_custom_call.1} parent=1 // pred_region
      _
    $region21: #{tpu_custom_call.1} parent=1 // pred_fallthru
      _
    // Predicated region
    $region22: #{tpu_custom_call.1} parent=1 // pred_check
      _
    $region23: #{tpu_custom_call.1} parent=1 // pred_check_branch
      %30 = sbr.rel (0) target = $region25
    $region24: #{tpu_custom_call.1} parent=1 // pred_region
      _
    $region25: #{tpu_custom_call.1} parent=1 // pred_fallthru
      _
    // Predicated region
    $region26: #{tpu_custom_call.1} parent=1 // pred_check
      _
    $region27: #{tpu_custom_call.1} parent=1 // pred_check_branch
      %32 = sbr.rel (0) target = $region29
    $region28: #{tpu_custom_call.1} parent=1 // pred_region
      _
    $region29: #{tpu_custom_call.1} parent=1 // pred_fallthru
      _
    // Predicated region
    $region30: #{tpu_custom_call.1} parent=1 // pred_check
      _
    $region31: #{tpu_custom_call.1} parent=1 // pred_check_branch
      %34 = sbr.rel (0) target = $region33
    $region32: #{tpu_custom_call.1} parent=1 // pred_region
      _
    $region33: #{tpu_custom_call.1} parent=1 // pred_fallthru
      _
    // Predicated region
    $region34: #{tpu_custom_call.1} parent=1 // pred_check
      _
    $region35: #{tpu_custom_call.1} parent=1 // pred_check_branch
      %36 = sbr.rel (0) target = $region37
    $region36: #{tpu_custom_call.1} parent=1 // pred_region
      _
    $region37: #{tpu_custom_call.1} parent=1 // pred_fallthru
      _
    // Predicated region
    $region38: #{tpu_custom_call.1} parent=1 // pred_check
      _
    $region39: #{tpu_custom_call.1} parent=1 // pred_check_branch
      %38 = sbr.rel (0) target = $region41
    $region40: #{tpu_custom_call.1} parent=1 // pred_region
      _
    $region41: #{tpu_custom_call.1} parent=1 // pred_fallthru
      _
    // Predicated region
    $region42: #{tpu_custom_call.1} parent=1 // pred_check
      _
    $region43: #{tpu_custom_call.1} parent=1 // pred_check_branch
      %40 = sbr.rel (0) target = $region45
    $region44: #{tpu_custom_call.1} parent=1 // pred_region
      _
    $region45: #{tpu_custom_call.1} parent=1 // pred_fallthru
      _
    %p42 = scmp.eq.s32.totalorder 0, 0
    // Predicated region
    $region46: #{tpu_custom_call.1} parent=1 // pred_check
      %p43 = pneg %p42
    $region47: #{tpu_custom_call.1} parent=1 // pred_check_branch
      %45 = sbr.rel (%p43) target = $region49
    $region48: #{tpu_custom_call.1} parent=1 // pred_region
      %v46 = vld [vmem:[%s3] sm:$0xff]
      %v47 = vld [vmem:[%s3 + $0x8] sm:$0xff]
      %v48 = vld [vmem:[%s3 + $0x10] sm:$0xff]
      %v49 = vld [vmem:[%s3 + $0x18] sm:$0xff]
      %v50 = vld [vmem:[%s3 + $0x20] sm:$0xff]
      %v51 = vld [vmem:[%s3 + $0x28] sm:$0xff]
      %v52 = vld [vmem:[%s3 + $0x30] sm:$0xff]
      %v53 = vld [vmem:[%s3 + $0x38] sm:$0xff]
      %v54 = vld [vmem:[%s3 + $0x40] sm:$0xff]
      %v55 = vld [vmem:[%s3 + $0x48] sm:$0xff]
      %v56 = vld [vmem:[%s3 + $0x50] sm:$0xff]
      %v57 = vld [vmem:[%s3 + $0x58] sm:$0xff]
      %v58 = vld [vmem:[%s3 + $0x60] sm:$0xff]
      %v59 = vld [vmem:[%s3 + $0x68] sm:$0xff]
      %v60 = vld [vmem:[%s3 + $0x70] sm:$0xff]
      %v61 = vld [vmem:[%s3 + $0x78] sm:$0xff]
      %v62 = vld [vmem:[%s4] sm:$0xff]
      %v63 = vld [vmem:[%s4 + $0x8] sm:$0xff]
      %v64 = vld [vmem:[%s4 + $0x10] sm:$0xff]
      %v65 = vld [vmem:[%s4 + $0x18] sm:$0xff]
      %v66 = vld [vmem:[%s5] sm:$0x1]
      %v68 = vlaneseq
      %v69 = vshrl.u32 %v68, 7
      %v70 = vsub.s32 0, %v69
      %v71 = vrot.slane %v66, %v70
      %vm73 = vcmask 261120
      %v75 = vsel %vm73, %v46, 0
      %v78 = vsel %vm73, %v47, 0
      %v81 = vsel %vm73, %v48, 0
      %v84 = vsel %vm73, %v49, 0
      %v87 = vsel %vm73, %v50, 0
      %v90 = vsel %vm73, %v51, 0
      %v93 = vsel %vm73, %v52, 0
      %v96 = vsel %vm73, %v53, 0
      %v99 = vsel %vm73, %v54, 0
      %v102 = vsel %vm73, %v55, 0
      %v105 = vsel %vm73, %v56, 0
      %v108 = vsel %vm73, %v57, 0
      %v111 = vsel %vm73, %v58, 0
      %v114 = vsel %vm73, %v59, 0
      %v117 = vsel %vm73, %v60, 0
      %v120 = vsel %vm73, %v61, 0
      %122 = vmatprep.subr.mxu0 0.0
      %123 = vmatpush1.msra.mxu0 %v62
      %124 = vmatprep.subr.mxu0 0.0
      %125 = vmatpush1.msra.mxu0 %v63
      %126 = vmatprep.subr.mxu0 0.0
      %127 = vmatpush1.msra.mxu0 %v64
      %128 = vmatprep.subr.mxu0 0.0
      %129 = vmatpush1.msra.mxu0 %v65
      %130 = vmatprep.subr.mxu0 0.0
      %131 = vmatpush1.msra.mxu0 0.0
      %132 = vmatprep.subr.mxu0 0.0
      %133 = vmatpush1.msra.mxu0 0.0
      %134 = vmatprep.subr.mxu0 0.0
      %135 = vmatpush1.msra.mxu0 0.0
      %136 = vmatprep.subr.mxu0 0.0
      %137 = vmatpush1.msra.mxu0 0.0
      %138 = vmatprep.subr.mxu0 0.0
      %139 = vmatpush1.msra.mxu0 0.0
      %140 = vmatprep.subr.mxu0 0.0
      %141 = vmatpush1.msra.mxu0 0.0
      %142 = vmatprep.subr.mxu0 0.0
      %143 = vmatpush1.msra.mxu0 0.0
      %144 = vmatprep.subr.mxu0 0.0
      %145 = vmatpush1.msra.mxu0 0.0
      %146 = vmatprep.subr.mxu0 0.0
      %147 = vmatpush1.msra.mxu0 0.0
      %148 = vmatprep.subr.mxu0 0.0
      %149 = vmatpush1.msra.mxu0 0.0
      %150 = vmatprep.subr.mxu0 0.0
      %151 = vmatpush1.msra.mxu0 0.0
      %152 = vmatprep.subr.mxu0 0.0
      %153 = vmatpush1.msra.mxu0 0.0
      %154 = vmatprep.subr.mxu0 0.0
      %155 = vmatpush1.msra.mxu0 0.0
      %156 = vmatprep.subr.mxu0 0.0
      %157 = vmatpush1.msra.mxu0 0.0
      %158 = vmatprep.subr.mxu0 0.0
      %159 = vmatpush1.msra.mxu0 0.0
      %160 = vmatprep.subr.mxu0 0.0
      %161 = vmatpush1.msra.mxu0 0.0
      %162 = vmatprep.subr.mxu0 0.0
      %163 = vmatpush1.msra.mxu0 0.0
      %164 = vmatprep.subr.mxu0 0.0
      %165 = vmatpush1.msra.mxu0 0.0
      %166 = vmatprep.subr.mxu0 0.0
      %167 = vmatpush1.msra.mxu0 0.0
      %168 = vmatprep.subr.mxu0 0.0
      %169 = vmatpush1.msra.mxu0 0.0
      %170 = vmatprep.subr.mxu0 0.0
      %171 = vmatpush1.msra.mxu0 0.0
      %172 = vmatprep.subr.mxu0 0.0
      %173 = vmatpush1.msra.mxu0 0.0
      %174 = vmatprep.subr.mxu0 0.0
      %175 = vmatpush1.msra.mxu0 0.0
      %176 = vmatprep.subr.mxu0 0.0
      %177 = vmatpush1.msra.mxu0 0.0
      %178 = vmatprep.subr.mxu0 0.0
      %179 = vmatpush1.msra.mxu0 0.0
      %180 = vmatprep.subr.mxu0 0.0
      %181 = vmatpush1.msra.mxu0 0.0
      %182 = vmatprep.subr.mxu0 0.0
      %183 = vmatpush1.msra.mxu0 0.0
      %184 = vmatprep.subr.mxu0 0.0
      %185 = vmatpush1.msra.mxu0 0.0
      %186 = vmatprep.mubr.f32.mxu0 0.0
      %187 = vmatmul.mubr.f32.gmra.mrb[0].mxu0 %v75
      %v188 = vpop.f32.mrb[0].mxu0
      %v189 = vadd.f32 %v71, %v188
      %v190 = vpop.f32.mrb[0].mxu0
      %191 = vmatprep.mubr.f32.mxu0 0.0
      %192 = vmatmul.mubr.f32.gmra.mrb[0].mxu0 %v78
      %v193 = vpop.f32.mrb[0].mxu0
      %v194 = vadd.f32 %v71, %v193
      %v195 = vpop.f32.mrb[0].mxu0
      %196 = vmatprep.mubr.f32.mxu0 0.0
      %197 = vmatmul.mubr.f32.gmra.mrb[0].mxu0 %v81
      %v198 = vpop.f32.mrb[0].mxu0
      %v199 = vadd.f32 %v71, %v198
      %v200 = vpop.f32.mrb[0].mxu0
      %201 = vmatprep.mubr.f32.mxu0 0.0
      %202 = vmatmul.mubr.f32.gmra.mrb[0].mxu0 %v84
      %v203 = vpop.f32.mrb[0].mxu0
      %v204 = vadd.f32 %v71, %v203
      %v205 = vpop.f32.mrb[0].mxu0
      %206 = vmatprep.mubr.f32.mxu0 0.0
      %207 = vmatmul.mubr.f32.gmra.mrb[0].mxu0 %v87
      %v208 = vpop.f32.mrb[0].mxu0
      %v209 = vadd.f32 %v71, %v208
      %v210 = vpop.f32.mrb[0].mxu0
      %211 = vmatprep.mubr.f32.mxu0 0.0
      %212 = vmatmul.mubr.f32.gmra.mrb[0].mxu0 %v90
      %v213 = vpop.f32.mrb[0].mxu0
      %v214 = vadd.f32 %v71, %v213
      %v215 = vpop.f32.mrb[0].mxu0
      %216 = vmatprep.mubr.f32.mxu0 0.0
      %217 = vmatmul.mubr.f32.gmra.mrb[0].mxu0 %v93
      %v218 = vpop.f32.mrb[0].mxu0
      %v219 = vadd.f32 %v71, %v218
      %v220 = vpop.f32.mrb[0].mxu0
      %221 = vmatprep.mubr.f32.mxu0 0.0
      %222 = vmatmul.mubr.f32.gmra.mrb[0].mxu0 %v96
      %v223 = vpop.f32.mrb[0].mxu0
      %v224 = vadd.f32 %v71, %v223
      %v225 = vpop.f32.mrb[0].mxu0
      %226 = vmatprep.mubr.f32.mxu0 0.0
      %227 = vmatmul.mubr.f32.gmra.mrb[0].mxu0 %v99
      %v228 = vpop.f32.mrb[0].mxu0
      %v229 = vadd.f32 %v71, %v228
      %v230 = vpop.f32.mrb[0].mxu0
      %231 = vmatprep.mubr.f32.mxu0 0.0
      %232 = vmatmul.mubr.f32.gmra.mrb[0].mxu0 %v102
      %v233 = vpop.f32.mrb[0].mxu0
      %v234 = vadd.f32 %v71, %v233
      %v235 = vpop.f32.mrb[0].mxu0
      %236 = vmatprep.mubr.f32.mxu0 0.0
      %237 = vmatmul.mubr.f32.gmra.mrb[0].mxu0 %v105
      %v238 = vpop.f32.mrb[0].mxu0
      %v239 = vadd.f32 %v71, %v238
      %v240 = vpop.f32.mrb[0].mxu0
      %241 = vmatprep.mubr.f32.mxu0 0.0
      %242 = vmatmul.mubr.f32.gmra.mrb[0].mxu0 %v108
      %v243 = vpop.f32.mrb[0].mxu0
      %v244 = vadd.f32 %v71, %v243
      %v245 = vpop.f32.mrb[0].mxu0
      %246 = vmatprep.mubr.f32.mxu0 0.0
      %247 = vmatmul.mubr.f32.gmra.mrb[0].mxu0 %v111
      %v248 = vpop.f32.mrb[0].mxu0
      %v249 = vadd.f32 %v71, %v248
      %v250 = vpop.f32.mrb[0].mxu0
      %251 = vmatprep.mubr.f32.mxu0 0.0
      %252 = vmatmul.mubr.f32.gmra.mrb[0].mxu0 %v114
      %v253 = vpop.f32.mrb[0].mxu0
      %v254 = vadd.f32 %v71, %v253
      %v255 = vpop.f32.mrb[0].mxu0
      %256 = vmatprep.mubr.f32.mxu0 0.0
      %257 = vmatmul.mubr.f32.gmra.mrb[0].mxu0 %v117
      %v258 = vpop.f32.mrb[0].mxu0
      %v259 = vadd.f32 %v71, %v258
      %v260 = vpop.f32.mrb[0].mxu0
      %261 = vmatprep.mubr.f32.mxu0 0.0
      %262 = vmatmul.mubr.f32.gmra.mrb[0].mxu0 %v120
      %v263 = vpop.f32.mrb[0].mxu0
      %v264 = vadd.f32 %v71, %v263
      %v265 = vpop.f32.mrb[0].mxu0
      %266 = vdwg.mxu0
      %v267 = vld [vmem:[%s6] sm:$0xff]
      %v268 = vld [vmem:[%s6 + $0x8] sm:$0xff]
      %v269 = vld [vmem:[%s6 + $0x10] sm:$0xff]
      %v270 = vld [vmem:[%s6 + $0x18] sm:$0xff]
      %v271 = vld [vmem:[%s6 + $0x20] sm:$0xff]
      %v272 = vld [vmem:[%s6 + $0x28] sm:$0xff]
      %v273 = vld [vmem:[%s6 + $0x30] sm:$0xff]
      %v274 = vld [vmem:[%s6 + $0x38] sm:$0xff]
      %v275 = vld [vmem:[%s6 + $0x40] sm:$0xff]
      %v276 = vld [vmem:[%s6 + $0x48] sm:$0xff]
      %v277 = vld [vmem:[%s6 + $0x50] sm:$0xff]
      %v278 = vld [vmem:[%s6 + $0x58] sm:$0xff]
      %v279 = vld [vmem:[%s6 + $0x60] sm:$0xff]
      %v280 = vld [vmem:[%s6 + $0x68] sm:$0xff]
      %v281 = vld [vmem:[%s6 + $0x70] sm:$0xff]
      %v282 = vld [vmem:[%s6 + $0x78] sm:$0xff]
      %284 = vset.pattern.permute.xlu0 0
      %285 = vperm.xlu0 %284, %v267
      %v286 = vpop.permute.xlu0 %285
      %289 = vset.pattern.permute.xlu0 0
      %290 = vperm.xlu0 %289, %v268
      %v291 = vpop.permute.xlu0 %290
      %294 = vset.pattern.permute.xlu0 0
      %295 = vperm.xlu0 %294, %v269
      %v296 = vpop.permute.xlu0 %295
      %299 = vset.pattern.permute.xlu0 0
      %300 = vperm.xlu0 %299, %v270
      %v301 = vpop.permute.xlu0 %300
      %304 = vset.pattern.permute.xlu0 0
      %305 = vperm.xlu0 %304, %v271
      %v306 = vpop.permute.xlu0 %305
      %309 = vset.pattern.permute.xlu0 0
      %310 = vperm.xlu0 %309, %v272
      %v311 = vpop.permute.xlu0 %310
      %314 = vset.pattern.permute.xlu0 0
      %315 = vperm.xlu0 %314, %v273
      %v316 = vpop.permute.xlu0 %315
      %319 = vset.pattern.permute.xlu0 0
      %320 = vperm.xlu0 %319, %v274
      %v321 = vpop.permute.xlu0 %320
      %324 = vset.pattern.permute.xlu0 0
      %325 = vperm.xlu0 %324, %v275
      %v326 = vpop.permute.xlu0 %325
      %329 = vset.pattern.permute.xlu0 0
      %330 = vperm.xlu0 %329, %v276
      %v331 = vpop.permute.xlu0 %330
      %334 = vset.pattern.permute.xlu0 0
      %335 = vperm.xlu0 %334, %v277
      %v336 = vpop.permute.xlu0 %335
      %339 = vset.pattern.permute.xlu0 0
      %340 = vperm.xlu0 %339, %v278
      %v341 = vpop.permute.xlu0 %340
      %344 = vset.pattern.permute.xlu0 0
      %345 = vperm.xlu0 %344, %v279
      %v346 = vpop.permute.xlu0 %345
      %349 = vset.pattern.permute.xlu0 0
      %350 = vperm.xlu0 %349, %v280
      %v351 = vpop.permute.xlu0 %350
      %354 = vset.pattern.permute.xlu0 0
      %355 = vperm.xlu0 %354, %v281
      %v356 = vpop.permute.xlu0 %355
      %359 = vset.pattern.permute.xlu0 0
      %360 = vperm.xlu0 %359, %v282
      %v361 = vpop.permute.xlu0 %360
      %v363 = vmul.f32 %v286, %v189
      %v364 = vmul.f32 %v291, %v194
      %v365 = vmul.f32 %v296, %v199
      %v366 = vmul.f32 %v301, %v204
      %v367 = vmul.f32 %v306, %v209
      %v368 = vmul.f32 %v311, %v214
      %v369 = vmul.f32 %v316, %v219
      %v370 = vmul.f32 %v321, %v224
      %v371 = vmul.f32 %v326, %v229
      %v372 = vmul.f32 %v331, %v234
      %v373 = vmul.f32 %v336, %v239
      %v374 = vmul.f32 %v341, %v244
      %v375 = vmul.f32 %v346, %v249
      %v376 = vmul.f32 %v351, %v254
      %v377 = vmul.f32 %v356, %v259
      %v378 = vmul.f32 %v361, %v264
      %v379 = vsub.f32 1.0, %v267
      %v380 = vsub.f32 1.0, %v268
      %v381 = vsub.f32 1.0, %v269
      %v382 = vsub.f32 1.0, %v270
      %v383 = vsub.f32 1.0, %v271
      %v384 = vsub.f32 1.0, %v272
      %v385 = vsub.f32 1.0, %v273
      %v386 = vsub.f32 1.0, %v274
      %v387 = vsub.f32 1.0, %v275
      %v388 = vsub.f32 1.0, %v276
      %v389 = vsub.f32 1.0, %v277
      %v390 = vsub.f32 1.0, %v278
      %v391 = vsub.f32 1.0, %v279
      %v392 = vsub.f32 1.0, %v280
      %v393 = vsub.f32 1.0, %v281
      %v394 = vsub.f32 1.0, %v282
      %v395 = vld [vmem:[%s0] sm:$0xff]
      %v396 = vld [vmem:[%s0 + $0x8] sm:$0xff]
      %v397 = vld [vmem:[%s0 + $0x10] sm:$0xff]
      %v398 = vld [vmem:[%s0 + $0x18] sm:$0xff]
      %v399 = vld [vmem:[%s0 + $0x20] sm:$0xff]
      %v400 = vld [vmem:[%s0 + $0x28] sm:$0xff]
      %v401 = vld [vmem:[%s0 + $0x30] sm:$0xff]
      %v402 = vld [vmem:[%s0 + $0x38] sm:$0xff]
      %v403 = vld [vmem:[%s0 + $0x40] sm:$0xff]
      %v404 = vld [vmem:[%s0 + $0x48] sm:$0xff]
      %v405 = vld [vmem:[%s0 + $0x50] sm:$0xff]
      %v406 = vld [vmem:[%s0 + $0x58] sm:$0xff]
      %v407 = vld [vmem:[%s0 + $0x60] sm:$0xff]
      %v408 = vld [vmem:[%s0 + $0x68] sm:$0xff]
      %v409 = vld [vmem:[%s0 + $0x70] sm:$0xff]
      %v410 = vld [vmem:[%s0 + $0x78] sm:$0xff]
      %412 = vset.pattern.permute.xlu0 0
      %413 = vperm.xlu0 %412, %v379
      %v414 = vpop.permute.xlu0 %413
      %417 = vset.pattern.permute.xlu0 0
      %418 = vperm.xlu0 %417, %v380
      %v419 = vpop.permute.xlu0 %418
      %422 = vset.pattern.permute.xlu0 0
      %423 = vperm.xlu0 %422, %v381
      %v424 = vpop.permute.xlu0 %423
      %427 = vset.pattern.permute.xlu0 0
      %428 = vperm.xlu0 %427, %v382
      %v429 = vpop.permute.xlu0 %428
      %432 = vset.pattern.permute.xlu0 0
      %433 = vperm.xlu0 %432, %v383
      %v434 = vpop.permute.xlu0 %433
      %437 = vset.pattern.permute.xlu0 0
      %438 = vperm.xlu0 %437, %v384
      %v439 = vpop.permute.xlu0 %438
      %442 = vset.pattern.permute.xlu0 0
      %443 = vperm.xlu0 %442, %v385
      %v444 = vpop.permute.xlu0 %443
      %447 = vset.pattern.permute.xlu0 0
      %448 = vperm.xlu0 %447, %v386
      %v449 = vpop.permute.xlu0 %448
      %452 = vset.pattern.permute.xlu0 0
      %453 = vperm.xlu0 %452, %v387
      %v454 = vpop.permute.xlu0 %453
      %457 = vset.pattern.permute.xlu0 0
      %458 = vperm.xlu0 %457, %v388
      %v459 = vpop.permute.xlu0 %458
      %462 = vset.pattern.permute.xlu0 0
      %463 = vperm.xlu0 %462, %v389
      %v464 = vpop.permute.xlu0 %463
      %467 = vset.pattern.permute.xlu0 0
      %468 = vperm.xlu0 %467, %v390
      %v469 = vpop.permute.xlu0 %468
      %472 = vset.pattern.permute.xlu0 0
      %473 = vperm.xlu0 %472, %v391
      %v474 = vpop.permute.xlu0 %473
      %477 = vset.pattern.permute.xlu0 0
      %478 = vperm.xlu0 %477, %v392
      %v479 = vpop.permute.xlu0 %478
      %482 = vset.pattern.permute.xlu0 0
      %483 = vperm.xlu0 %482, %v393
      %v484 = vpop.permute.xlu0 %483
      %487 = vset.pattern.permute.xlu0 0
      %488 = vperm.xlu0 %487, %v394
      %v489 = vpop.permute.xlu0 %488
      %v491 = vmul.f32 %v414, %v395
      %v492 = vmul.f32 %v419, %v396
      %v493 = vmul.f32 %v424, %v397
      %v494 = vmul.f32 %v429, %v398
      %v495 = vmul.f32 %v434, %v399
      %v496 = vmul.f32 %v439, %v400
      %v497 = vmul.f32 %v444, %v401
      %v498 = vmul.f32 %v449, %v402
      %v499 = vmul.f32 %v454, %v403
      %v500 = vmul.f32 %v459, %v404
      %v501 = vmul.f32 %v464, %v405
      %v502 = vmul.f32 %v469, %v406
      %v503 = vmul.f32 %v474, %v407
      %v504 = vmul.f32 %v479, %v408
      %v505 = vmul.f32 %v484, %v409
      %v506 = vmul.f32 %v489, %v410
      %v507 = vadd.f32 %v363, %v491
      %v508 = vadd.f32 %v364, %v492
      %v509 = vadd.f32 %v365, %v493
      %v510 = vadd.f32 %v366, %v494
      %v511 = vadd.f32 %v367, %v495
      %v512 = vadd.f32 %v368, %v496
      %v513 = vadd.f32 %v369, %v497
      %v514 = vadd.f32 %v370, %v498
      %v515 = vadd.f32 %v371, %v499
      %v516 = vadd.f32 %v372, %v500
      %v517 = vadd.f32 %v373, %v501
      %v518 = vadd.f32 %v374, %v502
      %v519 = vadd.f32 %v375, %v503
      %v520 = vadd.f32 %v376, %v504
      %v521 = vadd.f32 %v377, %v505
      %v522 = vadd.f32 %v378, %v506
      %vm523 = vcmask 130048
      %524 = vst.msk [vmem:[%s12] sm:$0xff] %vm523, %v507
      %525 = vst.msk [vmem:[%s12 + $0x8] sm:$0xff] %vm523, %v508
      %526 = vst.msk [vmem:[%s12 + $0x10] sm:$0xff] %vm523, %v509
      %527 = vst.msk [vmem:[%s12 + $0x18] sm:$0xff] %vm523, %v510
      %528 = vst.msk [vmem:[%s12 + $0x20] sm:$0xff] %vm523, %v511
      %529 = vst.msk [vmem:[%s12 + $0x28] sm:$0xff] %vm523, %v512
      %530 = vst.msk [vmem:[%s12 + $0x30] sm:$0xff] %vm523, %v513
      %531 = vst.msk [vmem:[%s12 + $0x38] sm:$0xff] %vm523, %v514
      %532 = vst.msk [vmem:[%s12 + $0x40] sm:$0xff] %vm523, %v515
      %533 = vst.msk [vmem:[%s12 + $0x48] sm:$0xff] %vm523, %v516
      %534 = vst.msk [vmem:[%s12 + $0x50] sm:$0xff] %vm523, %v517
      %535 = vst.msk [vmem:[%s12 + $0x58] sm:$0xff] %vm523, %v518
      %536 = vst.msk [vmem:[%s12 + $0x60] sm:$0xff] %vm523, %v519
      %537 = vst.msk [vmem:[%s12 + $0x68] sm:$0xff] %vm523, %v520
      %538 = vst.msk [vmem:[%s12 + $0x70] sm:$0xff] %vm523, %v521
      %539 = vst.msk [vmem:[%s12 + $0x78] sm:$0xff] %vm523, %v522
      %v540 = vmul.f32 %v507, -2.0
      %v541 = vmul.f32 %v508, -2.0
      %v542 = vmul.f32 %v509, -2.0
      %v543 = vmul.f32 %v510, -2.0
      %v544 = vmul.f32 %v511, -2.0
      %v545 = vmul.f32 %v512, -2.0
      %v546 = vmul.f32 %v513, -2.0
      %v547 = vmul.f32 %v514, -2.0
      %v548 = vmul.f32 %v515, -2.0
      %v549 = vmul.f32 %v516, -2.0
      %v550 = vmul.f32 %v517, -2.0
      %v551 = vmul.f32 %v518, -2.0
      %v552 = vmul.f32 %v519, -2.0
      %v553 = vmul.f32 %v520, -2.0
      %v554 = vmul.f32 %v521, -2.0
      %v555 = vmul.f32 %v522, -2.0
      %v556 = vpack.c.bf16 %v541, %v540
      %v557 = vpack.c.bf16 %v543, %v542
      %v558 = vpack.c.bf16 %v545, %v544
      %v559 = vpack.c.bf16 %v547, %v546
      %v560 = vpack.c.bf16 %v549, %v548
      %v561 = vpack.c.bf16 %v551, %v550
      %v562 = vpack.c.bf16 %v553, %v552
      %v563 = vpack.c.bf16 %v555, %v554
      %564 = vst.msk [vmem:[#allocation2] sm:$0xff] %vm523, %v556
      %565 = vst.msk [vmem:[#allocation2 + $0x8] sm:$0xff] %vm523, %v557
      %566 = vst.msk [vmem:[#allocation2 + $0x10] sm:$0xff] %vm523, %v558
      %567 = vst.msk [vmem:[#allocation2 + $0x18] sm:$0xff] %vm523, %v559
      %568 = vst.msk [vmem:[#allocation2 + $0x20] sm:$0xff] %vm523, %v560
      %569 = vst.msk [vmem:[#allocation2 + $0x28] sm:$0xff] %vm523, %v561
      %570 = vst.msk [vmem:[#allocation2 + $0x30] sm:$0xff] %vm523, %v562
      %571 = vst.msk [vmem:[#allocation2 + $0x38] sm:$0xff] %vm523, %v563
      %v572 = vmul.f32 %v507, %v507
      %v573 = vmul.f32 %v508, %v508
      %v574 = vmul.f32 %v509, %v509
      %v575 = vmul.f32 %v510, %v510
      %v576 = vmul.f32 %v511, %v511
      %v577 = vmul.f32 %v512, %v512
      %v578 = vmul.f32 %v513, %v513
      %v579 = vmul.f32 %v514, %v514
      %v580 = vmul.f32 %v515, %v515
      %v581 = vmul.f32 %v516, %v516
      %v582 = vmul.f32 %v517, %v517
      %v583 = vmul.f32 %v518, %v518
      %v584 = vmul.f32 %v519, %v519
      %v585 = vmul.f32 %v520, %v520
      %v586 = vmul.f32 %v521, %v521
      %v587 = vmul.f32 %v522, %v522
      %v588 = vsel %vm523, %v572, 0.0
      %589 = vadd.xlane.f32.xlu0 %v588
      %v590 = vpop.xlane.xlu0 %589
      %v591 = vsel %vm523, %v573, 0.0
      %592 = vadd.xlane.f32.xlu0 %v591
      %v593 = vpop.xlane.xlu0 %592
      %v594 = vsel %vm523, %v574, 0.0
      %595 = vadd.xlane.f32.xlu0 %v594
      %v596 = vpop.xlane.xlu0 %595
      %v597 = vsel %vm523, %v575, 0.0
      %598 = vadd.xlane.f32.xlu0 %v597
      %v599 = vpop.xlane.xlu0 %598
      %v600 = vsel %vm523, %v576, 0.0
      %601 = vadd.xlane.f32.xlu0 %v600
      %v602 = vpop.xlane.xlu0 %601
      %v603 = vsel %vm523, %v577, 0.0
      %604 = vadd.xlane.f32.xlu0 %v603
      %v605 = vpop.xlane.xlu0 %604
      %v606 = vsel %vm523, %v578, 0.0
      %607 = vadd.xlane.f32.xlu0 %v606
      %v608 = vpop.xlane.xlu0 %607
      %v609 = vsel %vm523, %v579, 0.0
      %610 = vadd.xlane.f32.xlu0 %v609
      %v611 = vpop.xlane.xlu0 %610
      %v612 = vsel %vm523, %v580, 0.0
      %613 = vadd.xlane.f32.xlu0 %v612
      %v614 = vpop.xlane.xlu0 %613
      %v615 = vsel %vm523, %v581, 0.0
      %616 = vadd.xlane.f32.xlu0 %v615
      %v617 = vpop.xlane.xlu0 %616
      %v618 = vsel %vm523, %v582, 0.0
      %619 = vadd.xlane.f32.xlu0 %v618
      %v620 = vpop.xlane.xlu0 %619
      %v621 = vsel %vm523, %v583, 0.0
      %622 = vadd.xlane.f32.xlu0 %v621
      %v623 = vpop.xlane.xlu0 %622
      %v624 = vsel %vm523, %v584, 0.0
      %625 = vadd.xlane.f32.xlu0 %v624
      %v626 = vpop.xlane.xlu0 %625
      %v627 = vsel %vm523, %v585, 0.0
      %628 = vadd.xlane.f32.xlu0 %v627
      %v629 = vpop.xlane.xlu0 %628
      %v630 = vsel %vm523, %v586, 0.0
      %631 = vadd.xlane.f32.xlu0 %v630
      %v632 = vpop.xlane.xlu0 %631
      %v633 = vsel %vm523, %v587, 0.0
      %634 = vadd.xlane.f32.xlu0 %v633
      %v635 = vpop.xlane.xlu0 %634
      %vm636 = vcmask 7168
      %637 = vst.msk [vmem:[#allocation3] sm:$0xff] %vm636, %v590
      %638 = vst.msk [vmem:[#allocation3 + $0x8] sm:$0xff] %vm636, %v593
      %639 = vst.msk [vmem:[#allocation3 + $0x10] sm:$0xff] %vm636, %v596
      %640 = vst.msk [vmem:[#allocation3 + $0x18] sm:$0xff] %vm636, %v599
      %641 = vst.msk [vmem:[#allocation3 + $0x20] sm:$0xff] %vm636, %v602
      %642 = vst.msk [vmem:[#allocation3 + $0x28] sm:$0xff] %vm636, %v605
      %643 = vst.msk [vmem:[#allocation3 + $0x30] sm:$0xff] %vm636, %v608
      %644 = vst.msk [vmem:[#allocation3 + $0x38] sm:$0xff] %vm636, %v611
      %645 = vst.msk [vmem:[#allocation3 + $0x40] sm:$0xff] %vm636, %v614
      %646 = vst.msk [vmem:[#allocation3 + $0x48] sm:$0xff] %vm636, %v617
      %647 = vst.msk [vmem:[#allocation3 + $0x50] sm:$0xff] %vm636, %v620
      %648 = vst.msk [vmem:[#allocation3 + $0x58] sm:$0xff] %vm636, %v623
      %649 = vst.msk [vmem:[#allocation3 + $0x60] sm:$0xff] %vm636, %v626
      %650 = vst.msk [vmem:[#allocation3 + $0x68] sm:$0xff] %vm636, %v629
      %651 = vst.msk [vmem:[#allocation3 + $0x70] sm:$0xff] %vm636, %v632
      %652 = vst.msk [vmem:[#allocation3 + $0x78] sm:$0xff] %vm636, %v635
      %653 = vst.msk [vmem:[#allocation4] sm:$0xff] %vm636, -inf
      %654 = vst.msk [vmem:[#allocation4 + $0x8] sm:$0xff] %vm636, -inf
      %655 = vst.msk [vmem:[#allocation4 + $0x10] sm:$0xff] %vm636, -inf
      %656 = vst.msk [vmem:[#allocation4 + $0x18] sm:$0xff] %vm636, -inf
      %657 = vst.msk [vmem:[#allocation4 + $0x20] sm:$0xff] %vm636, -inf
      %658 = vst.msk [vmem:[#allocation4 + $0x28] sm:$0xff] %vm636, -inf
      %659 = vst.msk [vmem:[#allocation4 + $0x30] sm:$0xff] %vm636, -inf
      %660 = vst.msk [vmem:[#allocation4 + $0x38] sm:$0xff] %vm636, -inf
      %661 = vst.msk [vmem:[#allocation4 + $0x40] sm:$0xff] %vm636, -inf
      %662 = vst.msk [vmem:[#allocation4 + $0x48] sm:$0xff] %vm636, -inf
      %663 = vst.msk [vmem:[#allocation4 + $0x50] sm:$0xff] %vm636, -inf
      %664 = vst.msk [vmem:[#allocation4 + $0x58] sm:$0xff] %vm636, -inf
      %665 = vst.msk [vmem:[#allocation4 + $0x60] sm:$0xff] %vm636, -inf
      %666 = vst.msk [vmem:[#allocation4 + $0x68] sm:$0xff] %vm636, -inf
      %667 = vst.msk [vmem:[#allocation4 + $0x70] sm:$0xff] %vm636, -inf
      %668 = vst.msk [vmem:[#allocation4 + $0x78] sm:$0xff] %vm636, -inf
      %669 = vst.msk [vmem:[#allocation5] sm:$0xff] %vm636, 1e+30
      %670 = vst.msk [vmem:[#allocation5 + $0x8] sm:$0xff] %vm636, 1e+30
      %671 = vst.msk [vmem:[#allocation5 + $0x10] sm:$0xff] %vm636, 1e+30
      %672 = vst.msk [vmem:[#allocation5 + $0x18] sm:$0xff] %vm636, 1e+30
      %673 = vst.msk [vmem:[#allocation5 + $0x20] sm:$0xff] %vm636, 1e+30
      %674 = vst.msk [vmem:[#allocation5 + $0x28] sm:$0xff] %vm636, 1e+30
      %675 = vst.msk [vmem:[#allocation5 + $0x30] sm:$0xff] %vm636, 1e+30
      %676 = vst.msk [vmem:[#allocation5 + $0x38] sm:$0xff] %vm636, 1e+30
      %677 = vst.msk [vmem:[#allocation5 + $0x40] sm:$0xff] %vm636, 1e+30
      %678 = vst.msk [vmem:[#allocation5 + $0x48] sm:$0xff] %vm636, 1e+30
      %679 = vst.msk [vmem:[#allocation5 + $0x50] sm:$0xff] %vm636, 1e+30
      %680 = vst.msk [vmem:[#allocation5 + $0x58] sm:$0xff] %vm636, 1e+30
      %681 = vst.msk [vmem:[#allocation5 + $0x60] sm:$0xff] %vm636, 1e+30
      %682 = vst.msk [vmem:[#allocation5 + $0x68] sm:$0xff] %vm636, 1e+30
      %683 = vst.msk [vmem:[#allocation5 + $0x70] sm:$0xff] %vm636, 1e+30
      %684 = vst.msk [vmem:[#allocation5 + $0x78] sm:$0xff] %vm636, 1e+30
    $region49: #{tpu_custom_call.1} parent=1 // pred_fallthru
      _
    %v685 = vld [vmem:[#allocation2] sm:$0xff]
    %v686 = vld [vmem:[#allocation2 + $0x8] sm:$0xff]
    %v687 = vld [vmem:[#allocation2 + $0x10] sm:$0xff]
    %v688 = vld [vmem:[#allocation2 + $0x18] sm:$0xff]
    %v689 = vld [vmem:[#allocation2 + $0x20] sm:$0xff]
    %v690 = vld [vmem:[#allocation2 + $0x28] sm:$0xff]
    %v691 = vld [vmem:[#allocation2 + $0x30] sm:$0xff]
    %v692 = vld [vmem:[#allocation2 + $0x38] sm:$0xff]
    %v693 = vld [vmem:[%s1] sm:$0xf]
    %v694 = vld [vmem:[%s1 + $0x4] sm:$0xf]
    %v697 = vunpack.c.l.b16 %v693
    %v698 = vunpack.c.l.b16 %v694
    %v699 = vpack.c.b16 %v698, %v697
    %vm701 = vcmask 130048
    %v703 = vsel %vm701, %v685, 0
    %v706 = vsel %vm701, %v686, 0
    %v709 = vsel %vm701, %v687, 0
    %v712 = vsel %vm701, %v688, 0
    %v715 = vsel %vm701, %v689, 0
    %v718 = vsel %vm701, %v690, 0
    %v721 = vsel %vm701, %v691, 0
    %v724 = vsel %vm701, %v692, 0
    %726 = vmatprep.subr.bf16.mxu0 0
    %727 = vmatpush1.bf16.msra.mxu0 %v699
    %728 = vmatprep.subr.bf16.mxu0 0
    %729 = vmatpush1.bf16.msra.mxu0 0
    %730 = vmatprep.subr.bf16.mxu0 0
    %731 = vmatpush1.bf16.msra.mxu0 0
    %732 = vmatprep.subr.bf16.mxu0 0
    %733 = vmatpush1.bf16.msra.mxu0 0
    %734 = vmatprep.subr.bf16.mxu0 0
    %735 = vmatpush1.bf16.msra.mxu0 0
    %736 = vmatprep.subr.bf16.mxu0 0
    %737 = vmatpush1.bf16.msra.mxu0 0
    %738 = vmatprep.subr.bf16.mxu0 0
    %739 = vmatpush1.bf16.msra.mxu0 0
    %740 = vmatprep.subr.bf16.mxu0 0
    %741 = vmatpush1.bf16.msra.mxu0 0
    %742 = vmatprep.subr.bf16.mxu0 0
    %743 = vmatpush1.bf16.msra.mxu0 0
    %744 = vmatprep.subr.bf16.mxu0 0
    %745 = vmatpush1.bf16.msra.mxu0 0
    %746 = vmatprep.subr.bf16.mxu0 0
    %747 = vmatpush1.bf16.msra.mxu0 0
    %748 = vmatprep.subr.bf16.mxu0 0
    %749 = vmatpush1.bf16.msra.mxu0 0
    %750 = vmatprep.subr.bf16.mxu0 0
    %751 = vmatpush1.bf16.msra.mxu0 0
    %752 = vmatprep.subr.bf16.mxu0 0
    %753 = vmatpush1.bf16.msra.mxu0 0
    %754 = vmatprep.subr.bf16.mxu0 0
    %755 = vmatpush1.bf16.msra.mxu0 0
    %756 = vmatprep.subr.bf16.mxu0 0
    %757 = vmatpush1.bf16.msra.mxu0 0
    %758 = vmatprep.mubr.bf16.mxu0 0
    %759 = vmatmul.mubr.bf16.gmra.mrb[0].mxu0 %v703
    %v760 = vpop.f32.mrb[0].mxu0
    %v761 = vadd.f32 0.0, %v760
    %v762 = vpop.f32.mrb[0].mxu0
    %v763 = vpop.f32.mrb[0].mxu0
    %v764 = vadd.f32 0.0, %v763
    %v765 = vpop.f32.mrb[0].mxu0
    %766 = vmatprep.mubr.bf16.mxu0 0
    %767 = vmatmul.mubr.bf16.gmra.mrb[0].mxu0 %v706
    %v768 = vpop.f32.mrb[0].mxu0
    %v769 = vadd.f32 0.0, %v768
    %v770 = vpop.f32.mrb[0].mxu0
    %v771 = vpop.f32.mrb[0].mxu0
    %v772 = vadd.f32 0.0, %v771
    %v773 = vpop.f32.mrb[0].mxu0
    %774 = vmatprep.mubr.bf16.mxu0 0
    %775 = vmatmul.mubr.bf16.gmra.mrb[0].mxu0 %v709
    %v776 = vpop.f32.mrb[0].mxu0
    %v777 = vadd.f32 0.0, %v776
    %v778 = vpop.f32.mrb[0].mxu0
    %v779 = vpop.f32.mrb[0].mxu0
    %v780 = vadd.f32 0.0, %v779
    %v781 = vpop.f32.mrb[0].mxu0
    %782 = vmatprep.mubr.bf16.mxu0 0
    %783 = vmatmul.mubr.bf16.gmra.mrb[0].mxu0 %v712
    %v784 = vpop.f32.mrb[0].mxu0
    %v785 = vadd.f32 0.0, %v784
    %v786 = vpop.f32.mrb[0].mxu0
    %v787 = vpop.f32.mrb[0].mxu0
    %v788 = vadd.f32 0.0, %v787
    %v789 = vpop.f32.mrb[0].mxu0
    %790 = vmatprep.mubr.bf16.mxu0 0
    %791 = vmatmul.mubr.bf16.gmra.mrb[0].mxu0 %v715
    %v792 = vpop.f32.mrb[0].mxu0
    %v793 = vadd.f32 0.0, %v792
    %v794 = vpop.f32.mrb[0].mxu0
    %v795 = vpop.f32.mrb[0].mxu0
    %v796 = vadd.f32 0.0, %v795
    %v797 = vpop.f32.mrb[0].mxu0
    %798 = vmatprep.mubr.bf16.mxu0 0
    %799 = vmatmul.mubr.bf16.gmra.mrb[0].mxu0 %v718
    %v800 = vpop.f32.mrb[0].mxu0
    %v801 = vadd.f32 0.0, %v800
    %v802 = vpop.f32.mrb[0].mxu0
    %v803 = vpop.f32.mrb[0].mxu0
    %v804 = vadd.f32 0.0, %v803
    %v805 = vpop.f32.mrb[0].mxu0
    %806 = vmatprep.mubr.bf16.mxu0 0
    %807 = vmatmul.mubr.bf16.gmra.mrb[0].mxu0 %v721
    %v808 = vpop.f32.mrb[0].mxu0
    %v809 = vadd.f32 0.0, %v808
    %v810 = vpop.f32.mrb[0].mxu0
    %v811 = vpop.f32.mrb[0].mxu0
    %v812 = vadd.f32 0.0, %v811
    %v813 = vpop.f32.mrb[0].mxu0
    %814 = vmatprep.mubr.bf16.mxu0 0
    %815 = vmatmul.mubr.bf16.gmra.mrb[0].mxu0 %v724
    %v816 = vpop.f32.mrb[0].mxu0
    %v817 = vadd.f32 0.0, %v816
    %v818 = vpop.f32.mrb[0].mxu0
    %v819 = vpop.f32.mrb[0].mxu0
    %v820 = vadd.f32 0.0, %v819
    %v821 = vpop.f32.mrb[0].mxu0
    %822 = vdwg.mxu0
    %v823 = vld [vmem:[#allocation3] sm:$0xff]
    %v824 = vld [vmem:[#allocation3 + $0x8] sm:$0xff]
    %v825 = vld [vmem:[#allocation3 + $0x10] sm:$0xff]
    %v826 = vld [vmem:[#allocation3 + $0x18] sm:$0xff]
    %v827 = vld [vmem:[#allocation3 + $0x20] sm:$0xff]
    %v828 = vld [vmem:[#allocation3 + $0x28] sm:$0xff]
    %v829 = vld [vmem:[#allocation3 + $0x30] sm:$0xff]
    %v830 = vld [vmem:[#allocation3 + $0x38] sm:$0xff]
    %v831 = vld [vmem:[#allocation3 + $0x40] sm:$0xff]
    %v832 = vld [vmem:[#allocation3 + $0x48] sm:$0xff]
    %v833 = vld [vmem:[#allocation3 + $0x50] sm:$0xff]
    %v834 = vld [vmem:[#allocation3 + $0x58] sm:$0xff]
    %v835 = vld [vmem:[#allocation3 + $0x60] sm:$0xff]
    %v836 = vld [vmem:[#allocation3 + $0x68] sm:$0xff]
    %v837 = vld [vmem:[#allocation3 + $0x70] sm:$0xff]
    %v838 = vld [vmem:[#allocation3 + $0x78] sm:$0xff]
    %v839 = vld [vmem:[%s2] sm:$0x1]
    %841 = vset.pattern.permute.xlu0 0
    %842 = vperm.xlu0 %841, %v823
    %v843 = vpop.permute.xlu0 %842
    %846 = vset.pattern.permute.xlu0 0
    %847 = vperm.xlu0 %846, %v824
    %v848 = vpop.permute.xlu0 %847
    %851 = vset.pattern.permute.xlu0 0
    %852 = vperm.xlu0 %851, %v825
    %v853 = vpop.permute.xlu0 %852
    %856 = vset.pattern.permute.xlu0 0
    %857 = vperm.xlu0 %856, %v826
    %v858 = vpop.permute.xlu0 %857
    %861 = vset.pattern.permute.xlu0 0
    %862 = vperm.xlu0 %861, %v827
    %v863 = vpop.permute.xlu0 %862
    %866 = vset.pattern.permute.xlu0 0
    %867 = vperm.xlu0 %866, %v828
    %v868 = vpop.permute.xlu0 %867
    %871 = vset.pattern.permute.xlu0 0
    %872 = vperm.xlu0 %871, %v829
    %v873 = vpop.permute.xlu0 %872
    %876 = vset.pattern.permute.xlu0 0
    %877 = vperm.xlu0 %876, %v830
    %v878 = vpop.permute.xlu0 %877
    %881 = vset.pattern.permute.xlu0 0
    %882 = vperm.xlu0 %881, %v831
    %v883 = vpop.permute.xlu0 %882
    %886 = vset.pattern.permute.xlu0 0
    %887 = vperm.xlu0 %886, %v832
    %v888 = vpop.permute.xlu0 %887
    %891 = vset.pattern.permute.xlu0 0
    %892 = vperm.xlu0 %891, %v833
    %v893 = vpop.permute.xlu0 %892
    %896 = vset.pattern.permute.xlu0 0
    %897 = vperm.xlu0 %896, %v834
    %v898 = vpop.permute.xlu0 %897
    %901 = vset.pattern.permute.xlu0 0
    %902 = vperm.xlu0 %901, %v835
    %v903 = vpop.permute.xlu0 %902
    %906 = vset.pattern.permute.xlu0 0
    %907 = vperm.xlu0 %906, %v836
    %v908 = vpop.permute.xlu0 %907
    %911 = vset.pattern.permute.xlu0 0
    %912 = vperm.xlu0 %911, %v837
    %v913 = vpop.permute.xlu0 %912
    %916 = vset.pattern.permute.xlu0 0
    %917 = vperm.xlu0 %916, %v838
    %v918 = vpop.permute.xlu0 %917
    %v921 = vlaneseq
    %v922 = vshrl.u32 %v921, 7
    %v923 = vsub.s32 0, %v922
    %v924 = vrot.slane %v839, %v923
    %v926 = vadd.f32 %v843, %v924
    %v927 = vadd.f32 %v848, %v924
    %v928 = vadd.f32 %v853, %v924
    %v929 = vadd.f32 %v858, %v924
    %v930 = vadd.f32 %v863, %v924
    %v931 = vadd.f32 %v868, %v924
    %v932 = vadd.f32 %v873, %v924
    %v933 = vadd.f32 %v878, %v924
    %v934 = vadd.f32 %v883, %v924
    %v935 = vadd.f32 %v888, %v924
    %v936 = vadd.f32 %v893, %v924
    %v937 = vadd.f32 %v898, %v924
    %v938 = vadd.f32 %v903, %v924
    %v939 = vadd.f32 %v908, %v924
    %v940 = vadd.f32 %v913, %v924
    %v941 = vadd.f32 %v918, %v924
    %v942 = vadd.f32 %v926, %v761
    %v943 = vadd.f32 %v927, %v764
    %v944 = vadd.f32 %v928, %v769
    %v945 = vadd.f32 %v929, %v772
    %v946 = vadd.f32 %v930, %v777
    %v947 = vadd.f32 %v931, %v780
    %v948 = vadd.f32 %v932, %v785
    %v949 = vadd.f32 %v933, %v788
    %v950 = vadd.f32 %v934, %v793
    %v951 = vadd.f32 %v935, %v796
    %v952 = vadd.f32 %v936, %v801
    %v953 = vadd.f32 %v937, %v804
    %v954 = vadd.f32 %v938, %v809
    %v955 = vadd.f32 %v939, %v812
    %v956 = vadd.f32 %v940, %v817
    %v957 = vadd.f32 %v941, %v820
    %v958 = vld [vmem:[%s7] sm:$0xff]
    %v959 = vld [vmem:[%s7 + $0x8] sm:$0xff]
    %v960 = vld [vmem:[%s7 + $0x10] sm:$0xff]
    %v961 = vld [vmem:[%s7 + $0x18] sm:$0xff]
    %v962 = vld [vmem:[%s7 + $0x20] sm:$0xff]
    %v963 = vld [vmem:[%s7 + $0x28] sm:$0xff]
    %v964 = vld [vmem:[%s7 + $0x30] sm:$0xff]
    %v965 = vld [vmem:[%s7 + $0x38] sm:$0xff]
    %v966 = vld [vmem:[%s7 + $0x40] sm:$0xff]
    %v967 = vld [vmem:[%s7 + $0x48] sm:$0xff]
    %v968 = vld [vmem:[%s7 + $0x50] sm:$0xff]
    %v969 = vld [vmem:[%s7 + $0x58] sm:$0xff]
    %v970 = vld [vmem:[%s7 + $0x60] sm:$0xff]
    %v971 = vld [vmem:[%s7 + $0x68] sm:$0xff]
    %v972 = vld [vmem:[%s7 + $0x70] sm:$0xff]
    %v973 = vld [vmem:[%s7 + $0x78] sm:$0xff]
    %v974 = vld [vmem:[%s8] sm:$0x1]
    %975 = vset.pattern.permute.xlu0 0
    %976 = vperm.xlu0 %975, %v958
    %v977 = vpop.permute.xlu0 %976
    %978 = vset.pattern.permute.xlu0 0
    %979 = vperm.xlu0 %978, %v959
    %v980 = vpop.permute.xlu0 %979
    %981 = vset.pattern.permute.xlu0 0
    %982 = vperm.xlu0 %981, %v960
    %v983 = vpop.permute.xlu0 %982
    %984 = vset.pattern.permute.xlu0 0
    %985 = vperm.xlu0 %984, %v961
    %v986 = vpop.permute.xlu0 %985
    %987 = vset.pattern.permute.xlu0 0
    %988 = vperm.xlu0 %987, %v962
    %v989 = vpop.permute.xlu0 %988
    %990 = vset.pattern.permute.xlu0 0
    %991 = vperm.xlu0 %990, %v963
    %v992 = vpop.permute.xlu0 %991
    %993 = vset.pattern.permute.xlu0 0
    %994 = vperm.xlu0 %993, %v964
    %v995 = vpop.permute.xlu0 %994
    %996 = vset.pattern.permute.xlu0 0
    %997 = vperm.xlu0 %996, %v965
    %v998 = vpop.permute.xlu0 %997
    %999 = vset.pattern.permute.xlu0 0
    %1000 = vperm.xlu0 %999, %v966
    %v1001 = vpop.permute.xlu0 %1000
    %1002 = vset.pattern.permute.xlu0 0
    %1003 = vperm.xlu0 %1002, %v967
    %v1004 = vpop.permute.xlu0 %1003
    %1005 = vset.pattern.permute.xlu0 0
    %1006 = vperm.xlu0 %1005, %v968
    %v1007 = vpop.permute.xlu0 %1006
    %1008 = vset.pattern.permute.xlu0 0
    %1009 = vperm.xlu0 %1008, %v969
    %v1010 = vpop.permute.xlu0 %1009
    %1011 = vset.pattern.permute.xlu0 0
    %1012 = vperm.xlu0 %1011, %v970
    %v1013 = vpop.permute.xlu0 %1012
    %1014 = vset.pattern.permute.xlu0 0
    %1015 = vperm.xlu0 %1014, %v971
    %v1016 = vpop.permute.xlu0 %1015
    %1017 = vset.pattern.permute.xlu0 0
    %1018 = vperm.xlu0 %1017, %v972
    %v1019 = vpop.permute.xlu0 %1018
    %1020 = vset.pattern.permute.xlu0 0
    %1021 = vperm.xlu0 %1020, %v973
    %v1022 = vpop.permute.xlu0 %1021
    %v1023 = vlaneseq
    %v1024 = vshrl.u32 %v1023, 7
    %v1025 = vsub.s32 0, %v1024
    %v1026 = vrot.slane %v974, %v1025
    %vm1027 = vcmp.eq.s32.totalorder %v977, %v1026
    %vm1028 = vcmp.eq.s32.totalorder %v980, %v1026
    %vm1029 = vcmp.eq.s32.totalorder %v983, %v1026
    %vm1030 = vcmp.eq.s32.totalorder %v986, %v1026
    %vm1031 = vcmp.eq.s32.totalorder %v989, %v1026
    %vm1032 = vcmp.eq.s32.totalorder %v992, %v1026
    %vm1033 = vcmp.eq.s32.totalorder %v995, %v1026
    %vm1034 = vcmp.eq.s32.totalorder %v998, %v1026
    %vm1035 = vcmp.eq.s32.totalorder %v1001, %v1026
    %vm1036 = vcmp.eq.s32.totalorder %v1004, %v1026
    %vm1037 = vcmp.eq.s32.totalorder %v1007, %v1026
    %vm1038 = vcmp.eq.s32.totalorder %v1010, %v1026
    %vm1039 = vcmp.eq.s32.totalorder %v1013, %v1026
    %vm1040 = vcmp.eq.s32.totalorder %v1016, %v1026
    %vm1041 = vcmp.eq.s32.totalorder %v1019, %v1026
    %vm1042 = vcmp.eq.s32.totalorder %v1022, %v1026
    %v1043 = vld [vmem:[%s9] sm:$0xff]
    %v1044 = vld [vmem:[%s9 + $0x8] sm:$0xff]
    %v1045 = vld [vmem:[%s9 + $0x10] sm:$0xff]
    %v1046 = vld [vmem:[%s9 + $0x18] sm:$0xff]
    %v1047 = vld [vmem:[%s9 + $0x20] sm:$0xff]
    %v1048 = vld [vmem:[%s9 + $0x28] sm:$0xff]
    %v1049 = vld [vmem:[%s9 + $0x30] sm:$0xff]
    %v1050 = vld [vmem:[%s9 + $0x38] sm:$0xff]
    %v1051 = vld [vmem:[%s9 + $0x40] sm:$0xff]
    %v1052 = vld [vmem:[%s9 + $0x48] sm:$0xff]
    %v1053 = vld [vmem:[%s9 + $0x50] sm:$0xff]
    %v1054 = vld [vmem:[%s9 + $0x58] sm:$0xff]
    %v1055 = vld [vmem:[%s9 + $0x60] sm:$0xff]
    %v1056 = vld [vmem:[%s9 + $0x68] sm:$0xff]
    %v1057 = vld [vmem:[%s9 + $0x70] sm:$0xff]
    %v1058 = vld [vmem:[%s9 + $0x78] sm:$0xff]
    %v1059 = vld [vmem:[%s10] sm:$0x1]
    %1060 = vset.pattern.permute.xlu0 0
    %1061 = vperm.xlu0 %1060, %v1043
    %v1062 = vpop.permute.xlu0 %1061
    %1063 = vset.pattern.permute.xlu0 0
    %1064 = vperm.xlu0 %1063, %v1044
    %v1065 = vpop.permute.xlu0 %1064
    %1066 = vset.pattern.permute.xlu0 0
    %1067 = vperm.xlu0 %1066, %v1045
    %v1068 = vpop.permute.xlu0 %1067
    %1069 = vset.pattern.permute.xlu0 0
    %1070 = vperm.xlu0 %1069, %v1046
    %v1071 = vpop.permute.xlu0 %1070
    %1072 = vset.pattern.permute.xlu0 0
    %1073 = vperm.xlu0 %1072, %v1047
    %v1074 = vpop.permute.xlu0 %1073
    %1075 = vset.pattern.permute.xlu0 0
    %1076 = vperm.xlu0 %1075, %v1048
    %v1077 = vpop.permute.xlu0 %1076
    %1078 = vset.pattern.permute.xlu0 0
    %1079 = vperm.xlu0 %1078, %v1049
    %v1080 = vpop.permute.xlu0 %1079
    %1081 = vset.pattern.permute.xlu0 0
    %1082 = vperm.xlu0 %1081, %v1050
    %v1083 = vpop.permute.xlu0 %1082
    %1084 = vset.pattern.permute.xlu0 0
    %1085 = vperm.xlu0 %1084, %v1051
    %v1086 = vpop.permute.xlu0 %1085
    %1087 = vset.pattern.permute.xlu0 0
    %1088 = vperm.xlu0 %1087, %v1052
    %v1089 = vpop.permute.xlu0 %1088
    %1090 = vset.pattern.permute.xlu0 0
    %1091 = vperm.xlu0 %1090, %v1053
    %v1092 = vpop.permute.xlu0 %1091
    %1093 = vset.pattern.permute.xlu0 0
    %1094 = vperm.xlu0 %1093, %v1054
    %v1095 = vpop.permute.xlu0 %1094
    %1096 = vset.pattern.permute.xlu0 0
    %1097 = vperm.xlu0 %1096, %v1055
    %v1098 = vpop.permute.xlu0 %1097
    %1099 = vset.pattern.permute.xlu0 0
    %1100 = vperm.xlu0 %1099, %v1056
    %v1101 = vpop.permute.xlu0 %1100
    %1102 = vset.pattern.permute.xlu0 0
    %1103 = vperm.xlu0 %1102, %v1057
    %v1104 = vpop.permute.xlu0 %1103
    %1105 = vset.pattern.permute.xlu0 0
    %1106 = vperm.xlu0 %1105, %v1058
    %v1107 = vpop.permute.xlu0 %1106
    %v1108 = vlaneseq
    %v1109 = vshrl.u32 %v1108, 7
    %v1110 = vsub.s32 0, %v1109
    %v1111 = vrot.slane %v1059, %v1110
    %vm1112 = vcmp.ne.s32.totalorder %v1062, %v1111
    %vm1113 = vcmp.ne.s32.totalorder %v1065, %v1111
    %vm1114 = vcmp.ne.s32.totalorder %v1068, %v1111
    %vm1115 = vcmp.ne.s32.totalorder %v1071, %v1111
    %vm1116 = vcmp.ne.s32.totalorder %v1074, %v1111
    %vm1117 = vcmp.ne.s32.totalorder %v1077, %v1111
    %vm1118 = vcmp.ne.s32.totalorder %v1080, %v1111
    %vm1119 = vcmp.ne.s32.totalorder %v1083, %v1111
    %vm1120 = vcmp.ne.s32.totalorder %v1086, %v1111
    %vm1121 = vcmp.ne.s32.totalorder %v1089, %v1111
    %vm1122 = vcmp.ne.s32.totalorder %v1092, %v1111
    %vm1123 = vcmp.ne.s32.totalorder %v1095, %v1111
    %vm1124 = vcmp.ne.s32.totalorder %v1098, %v1111
    %vm1125 = vcmp.ne.s32.totalorder %v1101, %v1111
    %vm1126 = vcmp.ne.s32.totalorder %v1104, %v1111
    %vm1127 = vcmp.ne.s32.totalorder %v1107, %v1111
    %vm1128 = vmand %vm1027, %vm1112
    %vm1129 = vmand %vm1028, %vm1113
    %vm1130 = vmand %vm1029, %vm1114
    %vm1131 = vmand %vm1030, %vm1115
    %vm1132 = vmand %vm1031, %vm1116
    %vm1133 = vmand %vm1032, %vm1117
    %vm1134 = vmand %vm1033, %vm1118
    %vm1135 = vmand %vm1034, %vm1119
    %vm1136 = vmand %vm1035, %vm1120
    %vm1137 = vmand %vm1036, %vm1121
    %vm1138 = vmand %vm1037, %vm1122
    %vm1139 = vmand %vm1038, %vm1123
    %vm1140 = vmand %vm1039, %vm1124
    %vm1141 = vmand %vm1040, %vm1125
    %vm1142 = vmand %vm1041, %vm1126
    %vm1143 = vmand %vm1042, %vm1127
    %vm1144 = vcmp.ge.s32.totalorder %v1059, 8
    %vm1145 = vmxor %vm1144, 1
    %v1146 = vsel %vm1145, 1, 0
    %v1147 = vlaneseq
    %v1148 = vshrl.u32 %v1147, 7
    %v1149 = vsub.s32 0, %v1148
    %v1150 = vrot.slane %v1146, %v1149
    %vm1151 = vcmp.eq.s32.totalorder %v1150, 1
    %vm1152 = vmand %vm1128, %vm1151
    %vm1153 = vmand %vm1129, %vm1151
    %vm1154 = vmand %vm1130, %vm1151
    %vm1155 = vmand %vm1131, %vm1151
    %vm1156 = vmand %vm1132, %vm1151
    %vm1157 = vmand %vm1133, %vm1151
    %vm1158 = vmand %vm1134, %vm1151
    %vm1159 = vmand %vm1135, %vm1151
    %vm1160 = vmand %vm1136, %vm1151
    %vm1161 = vmand %vm1137, %vm1151
    %vm1162 = vmand %vm1138, %vm1151
    %vm1163 = vmand %vm1139, %vm1151
    %vm1164 = vmand %vm1140, %vm1151
    %vm1165 = vmand %vm1141, %vm1151
    %vm1166 = vmand %vm1142, %vm1151
    %vm1167 = vmand %vm1143, %vm1151
    %v1168 = vsel %vm1144, 1, 0
    %v1169 = vlaneseq
    %v1170 = vshrl.u32 %v1169, 7
    %v1171 = vsub.s32 0, %v1170
    %v1172 = vrot.slane %v1168, %v1171
    %vm1173 = vcmp.eq.s32.totalorder %v1172, 1
    %vm1174 = vmor %vm1027, %vm1173
    %vm1175 = vmor %vm1028, %vm1173
    %vm1176 = vmor %vm1029, %vm1173
    %vm1177 = vmor %vm1030, %vm1173
    %vm1178 = vmor %vm1031, %vm1173
    %vm1179 = vmor %vm1032, %vm1173
    %vm1180 = vmor %vm1033, %vm1173
    %vm1181 = vmor %vm1034, %vm1173
    %vm1182 = vmor %vm1035, %vm1173
    %vm1183 = vmor %vm1036, %vm1173
    %vm1184 = vmor %vm1037, %vm1173
    %vm1185 = vmor %vm1038, %vm1173
    %vm1186 = vmor %vm1039, %vm1173
    %vm1187 = vmor %vm1040, %vm1173
    %vm1188 = vmor %vm1041, %vm1173
    %vm1189 = vmor %vm1042, %vm1173
    %v1190 = vsel %vm1152, %v942, -inf
    %v1191 = vsel %vm1153, %v943, -inf
    %v1192 = vsel %vm1154, %v944, -inf
    %v1193 = vsel %vm1155, %v945, -inf
    %v1194 = vsel %vm1156, %v946, -inf
    %v1195 = vsel %vm1157, %v947, -inf
    %v1196 = vsel %vm1158, %v948, -inf
    %v1197 = vsel %vm1159, %v949, -inf
    %v1198 = vsel %vm1160, %v950, -inf
    %v1199 = vsel %vm1161, %v951, -inf
    %v1200 = vsel %vm1162, %v952, -inf
    %v1201 = vsel %vm1163, %v953, -inf
    %v1202 = vsel %vm1164, %v954, -inf
    %v1203 = vsel %vm1165, %v955, -inf
    %v1204 = vsel %vm1166, %v956, -inf
    %v1205 = vsel %vm1167, %v957, -inf
    %1206 = vmax.xlane.f32.xlu0 %v1190
    %v1207 = vpop.xlane.xlu0 %1206
    %1208 = vmax.xlane.f32.xlu0 %v1191
    %v1209 = vpop.xlane.xlu0 %1208
    %1210 = vmax.xlane.f32.xlu0 %v1192
    %v1211 = vpop.xlane.xlu0 %1210
    %1212 = vmax.xlane.f32.xlu0 %v1193
    %v1213 = vpop.xlane.xlu0 %1212
    %1214 = vmax.xlane.f32.xlu0 %v1194
    %v1215 = vpop.xlane.xlu0 %1214
    %1216 = vmax.xlane.f32.xlu0 %v1195
    %v1217 = vpop.xlane.xlu0 %1216
    %1218 = vmax.xlane.f32.xlu0 %v1196
    %v1219 = vpop.xlane.xlu0 %1218
    %1220 = vmax.xlane.f32.xlu0 %v1197
    %v1221 = vpop.xlane.xlu0 %1220
    %1222 = vmax.xlane.f32.xlu0 %v1198
    %v1223 = vpop.xlane.xlu0 %1222
    %1224 = vmax.xlane.f32.xlu0 %v1199
    %v1225 = vpop.xlane.xlu0 %1224
    %1226 = vmax.xlane.f32.xlu0 %v1200
    %v1227 = vpop.xlane.xlu0 %1226
    %1228 = vmax.xlane.f32.xlu0 %v1201
    %v1229 = vpop.xlane.xlu0 %1228
    %1230 = vmax.xlane.f32.xlu0 %v1202
    %v1231 = vpop.xlane.xlu0 %1230
    %1232 = vmax.xlane.f32.xlu0 %v1203
    %v1233 = vpop.xlane.xlu0 %1232
    %1234 = vmax.xlane.f32.xlu0 %v1204
    %v1235 = vpop.xlane.xlu0 %1234
    %1236 = vmax.xlane.f32.xlu0 %v1205
    %v1237 = vpop.xlane.xlu0 %1236
    %v1238 = vsel %vm1174, 1e+30, %v942
    %v1239 = vsel %vm1175, 1e+30, %v943
    %v1240 = vsel %vm1176, 1e+30, %v944
    %v1241 = vsel %vm1177, 1e+30, %v945
    %v1242 = vsel %vm1178, 1e+30, %v946
    %v1243 = vsel %vm1179, 1e+30, %v947
    %v1244 = vsel %vm1180, 1e+30, %v948
    %v1245 = vsel %vm1181, 1e+30, %v949
    %v1246 = vsel %vm1182, 1e+30, %v950
    %v1247 = vsel %vm1183, 1e+30, %v951
    %v1248 = vsel %vm1184, 1e+30, %v952
    %v1249 = vsel %vm1185, 1e+30, %v953
    %v1250 = vsel %vm1186, 1e+30, %v954
    %v1251 = vsel %vm1187, 1e+30, %v955
    %v1252 = vsel %vm1188, 1e+30, %v956
    %v1253 = vsel %vm1189, 1e+30, %v957
    %1254 = vmin.xlane.f32.xlu0 %v1238
    %v1255 = vpop.xlane.xlu0 %1254
    %1256 = vmin.xlane.f32.xlu0 %v1239
    %v1257 = vpop.xlane.xlu0 %1256
    %1258 = vmin.xlane.f32.xlu0 %v1240
    %v1259 = vpop.xlane.xlu0 %1258
    %1260 = vmin.xlane.f32.xlu0 %v1241
    %v1261 = vpop.xlane.xlu0 %1260
    %1262 = vmin.xlane.f32.xlu0 %v1242
    %v1263 = vpop.xlane.xlu0 %1262
    %1264 = vmin.xlane.f32.xlu0 %v1243
    %v1265 = vpop.xlane.xlu0 %1264
    %1266 = vmin.xlane.f32.xlu0 %v1244
    %v1267 = vpop.xlane.xlu0 %1266
    %1268 = vmin.xlane.f32.xlu0 %v1245
    %v1269 = vpop.xlane.xlu0 %1268
    %1270 = vmin.xlane.f32.xlu0 %v1246
    %v1271 = vpop.xlane.xlu0 %1270
    %1272 = vmin.xlane.f32.xlu0 %v1247
    %v1273 = vpop.xlane.xlu0 %1272
    %1274 = vmin.xlane.f32.xlu0 %v1248
    %v1275 = vpop.xlane.xlu0 %1274
    %1276 = vmin.xlane.f32.xlu0 %v1249
    %v1277 = vpop.xlane.xlu0 %1276
    %1278 = vmin.xlane.f32.xlu0 %v1250
    %v1279 = vpop.xlane.xlu0 %1278
    %1280 = vmin.xlane.f32.xlu0 %v1251
    %v1281 = vpop.xlane.xlu0 %1280
    %1282 = vmin.xlane.f32.xlu0 %v1252
    %v1283 = vpop.xlane.xlu0 %1282
    %1284 = vmin.xlane.f32.xlu0 %v1253
    %v1285 = vpop.xlane.xlu0 %1284
    %v1286 = vld [vmem:[#allocation4] sm:$0xff]
    %v1287 = vld [vmem:[#allocation4 + $0x8] sm:$0xff]
    %v1288 = vld [vmem:[#allocation4 + $0x10] sm:$0xff]
    %v1289 = vld [vmem:[#allocation4 + $0x18] sm:$0xff]
    %v1290 = vld [vmem:[#allocation4 + $0x20] sm:$0xff]
    %v1291 = vld [vmem:[#allocation4 + $0x28] sm:$0xff]
    %v1292 = vld [vmem:[#allocation4 + $0x30] sm:$0xff]
    %v1293 = vld [vmem:[#allocation4 + $0x38] sm:$0xff]
    %v1294 = vld [vmem:[#allocation4 + $0x40] sm:$0xff]
    %v1295 = vld [vmem:[#allocation4 + $0x48] sm:$0xff]
    %v1296 = vld [vmem:[#allocation4 + $0x50] sm:$0xff]
    %v1297 = vld [vmem:[#allocation4 + $0x58] sm:$0xff]
    %v1298 = vld [vmem:[#allocation4 + $0x60] sm:$0xff]
    %v1299 = vld [vmem:[#allocation4 + $0x68] sm:$0xff]
    %v1300 = vld [vmem:[#allocation4 + $0x70] sm:$0xff]
    %v1301 = vld [vmem:[#allocation4 + $0x78] sm:$0xff]
    %v1302 = vmax.f32 %v1286, %v1207
    %v1303 = vmax.f32 %v1287, %v1209
    %v1304 = vmax.f32 %v1288, %v1211
    %v1305 = vmax.f32 %v1289, %v1213
    %v1306 = vmax.f32 %v1290, %v1215
    %v1307 = vmax.f32 %v1291, %v1217
    %v1308 = vmax.f32 %v1292, %v1219
    %v1309 = vmax.f32 %v1293, %v1221
    %v1310 = vmax.f32 %v1294, %v1223
    %v1311 = vmax.f32 %v1295, %v1225
    %v1312 = vmax.f32 %v1296, %v1227
    %v1313 = vmax.f32 %v1297, %v1229
    %v1314 = vmax.f32 %v1298, %v1231
    %v1315 = vmax.f32 %v1299, %v1233
    %v1316 = vmax.f32 %v1300, %v1235
    %v1317 = vmax.f32 %v1301, %v1237
    %vm1318 = vcmask 7168
    %1319 = vst.msk [vmem:[#allocation4] sm:$0xff] %vm1318, %v1302
    %1320 = vst.msk [vmem:[#allocation4 + $0x8] sm:$0xff] %vm1318, %v1303
    %1321 = vst.msk [vmem:[#allocation4 + $0x10] sm:$0xff] %vm1318, %v1304
    %1322 = vst.msk [vmem:[#allocation4 + $0x18] sm:$0xff] %vm1318, %v1305
    %1323 = vst.msk [vmem:[#allocation4 + $0x20] sm:$0xff] %vm1318, %v1306
    %1324 = vst.msk [vmem:[#allocation4 + $0x28] sm:$0xff] %vm1318, %v1307
    %1325 = vst.msk [vmem:[#allocation4 + $0x30] sm:$0xff] %vm1318, %v1308
    %1326 = vst.msk [vmem:[#allocation4 + $0x38] sm:$0xff] %vm1318, %v1309
    %1327 = vst.msk [vmem:[#allocation4 + $0x40] sm:$0xff] %vm1318, %v1310
    %1328 = vst.msk [vmem:[#allocation4 + $0x48] sm:$0xff] %vm1318, %v1311
    %1329 = vst.msk [vmem:[#allocation4 + $0x50] sm:$0xff] %vm1318, %v1312
    %1330 = vst.msk [vmem:[#allocation4 + $0x58] sm:$0xff] %vm1318, %v1313
    %1331 = vst.msk [vmem:[#allocation4 + $0x60] sm:$0xff] %vm1318, %v1314
    %1332 = vst.msk [vmem:[#allocation4 + $0x68] sm:$0xff] %vm1318, %v1315
    %1333 = vst.msk [vmem:[#allocation4 + $0x70] sm:$0xff] %vm1318, %v1316
    %1334 = vst.msk [vmem:[#allocation4 + $0x78] sm:$0xff] %vm1318, %v1317
    %v1335 = vld [vmem:[#allocation5] sm:$0xff]
    %v1336 = vld [vmem:[#allocation5 + $0x8] sm:$0xff]
    %v1337 = vld [vmem:[#allocation5 + $0x10] sm:$0xff]
    %v1338 = vld [vmem:[#allocation5 + $0x18] sm:$0xff]
    %v1339 = vld [vmem:[#allocation5 + $0x20] sm:$0xff]
    %v1340 = vld [vmem:[#allocation5 + $0x28] sm:$0xff]
    %v1341 = vld [vmem:[#allocation5 + $0x30] sm:$0xff]
    %v1342 = vld [vmem:[#allocation5 + $0x38] sm:$0xff]
    %v1343 = vld [vmem:[#allocation5 + $0x40] sm:$0xff]
    %v1344 = vld [vmem:[#allocation5 + $0x48] sm:$0xff]
    %v1345 = vld [vmem:[#allocation5 + $0x50] sm:$0xff]
    %v1346 = vld [vmem:[#allocation5 + $0x58] sm:$0xff]
    %v1347 = vld [vmem:[#allocation5 + $0x60] sm:$0xff]
    %v1348 = vld [vmem:[#allocation5 + $0x68] sm:$0xff]
    %v1349 = vld [vmem:[#allocation5 + $0x70] sm:$0xff]
    %v1350 = vld [vmem:[#allocation5 + $0x78] sm:$0xff]
    %v1351 = vmin.f32 %v1335, %v1255
    %v1352 = vmin.f32 %v1336, %v1257
    %v1353 = vmin.f32 %v1337, %v1259
    %v1354 = vmin.f32 %v1338, %v1261
    %v1355 = vmin.f32 %v1339, %v1263
    %v1356 = vmin.f32 %v1340, %v1265
    %v1357 = vmin.f32 %v1341, %v1267
    %v1358 = vmin.f32 %v1342, %v1269
    %v1359 = vmin.f32 %v1343, %v1271
    %v1360 = vmin.f32 %v1344, %v1273
    %v1361 = vmin.f32 %v1345, %v1275
    %v1362 = vmin.f32 %v1346, %v1277
    %v1363 = vmin.f32 %v1347, %v1279
    %v1364 = vmin.f32 %v1348, %v1281
    %v1365 = vmin.f32 %v1349, %v1283
    %v1366 = vmin.f32 %v1350, %v1285
    %1367 = vst.msk [vmem:[#allocation5] sm:$0xff] %vm1318, %v1351
    %1368 = vst.msk [vmem:[#allocation5 + $0x8] sm:$0xff] %vm1318, %v1352
    %1369 = vst.msk [vmem:[#allocation5 + $0x10] sm:$0xff] %vm1318, %v1353
    %1370 = vst.msk [vmem:[#allocation5 + $0x18] sm:$0xff] %vm1318, %v1354
    %1371 = vst.msk [vmem:[#allocation5 + $0x20] sm:$0xff] %vm1318, %v1355
    %1372 = vst.msk [vmem:[#allocation5 + $0x28] sm:$0xff] %vm1318, %v1356
    %1373 = vst.msk [vmem:[#allocation5 + $0x30] sm:$0xff] %vm1318, %v1357
    %1374 = vst.msk [vmem:[#allocation5 + $0x38] sm:$0xff] %vm1318, %v1358
    %1375 = vst.msk [vmem:[#allocation5 + $0x40] sm:$0xff] %vm1318, %v1359
    %1376 = vst.msk [vmem:[#allocation5 + $0x48] sm:$0xff] %vm1318, %v1360
    %1377 = vst.msk [vmem:[#allocation5 + $0x50] sm:$0xff] %vm1318, %v1361
    %1378 = vst.msk [vmem:[#allocation5 + $0x58] sm:$0xff] %vm1318, %v1362
    %1379 = vst.msk [vmem:[#allocation5 + $0x60] sm:$0xff] %vm1318, %v1363
    %1380 = vst.msk [vmem:[#allocation5 + $0x68] sm:$0xff] %vm1318, %v1364
    %1381 = vst.msk [vmem:[#allocation5 + $0x70] sm:$0xff] %vm1318, %v1365
    %1382 = vst.msk [vmem:[#allocation5 + $0x78] sm:$0xff] %vm1318, %v1366
    // Predicated region
    $region50: #{tpu_custom_call.1} parent=1 // pred_check
      %p1383 = pneg %p42
    $region51: #{tpu_custom_call.1} parent=1 // pred_check_branch
      %1385 = sbr.rel (%p1383) target = $region53
    $region52: #{tpu_custom_call.1} parent=1 // pred_region
      %v1386 = vld [vmem:[#allocation4] sm:$0xff]
      %v1387 = vld [vmem:[#allocation4 + $0x8] sm:$0xff]
      %v1388 = vld [vmem:[#allocation4 + $0x10] sm:$0xff]
      %v1389 = vld [vmem:[#allocation4 + $0x18] sm:$0xff]
      %v1390 = vld [vmem:[#allocation4 + $0x20] sm:$0xff]
      %v1391 = vld [vmem:[#allocation4 + $0x28] sm:$0xff]
      %v1392 = vld [vmem:[#allocation4 + $0x30] sm:$0xff]
      %v1393 = vld [vmem:[#allocation4 + $0x38] sm:$0xff]
      %v1394 = vld [vmem:[#allocation4 + $0x40] sm:$0xff]
      %v1395 = vld [vmem:[#allocation4 + $0x48] sm:$0xff]
      %v1396 = vld [vmem:[#allocation4 + $0x50] sm:$0xff]
      %v1397 = vld [vmem:[#allocation4 + $0x58] sm:$0xff]
      %v1398 = vld [vmem:[#allocation4 + $0x60] sm:$0xff]
      %v1399 = vld [vmem:[#allocation4 + $0x68] sm:$0xff]
      %v1400 = vld [vmem:[#allocation4 + $0x70] sm:$0xff]
      %v1401 = vld [vmem:[#allocation4 + $0x78] sm:$0xff]
      %v1402 = vld [vmem:[#allocation5] sm:$0xff]
      %v1403 = vld [vmem:[#allocation5 + $0x8] sm:$0xff]
      %v1404 = vld [vmem:[#allocation5 + $0x10] sm:$0xff]
      %v1405 = vld [vmem:[#allocation5 + $0x18] sm:$0xff]
      %v1406 = vld [vmem:[#allocation5 + $0x20] sm:$0xff]
      %v1407 = vld [vmem:[#allocation5 + $0x28] sm:$0xff]
      %v1408 = vld [vmem:[#allocation5 + $0x30] sm:$0xff]
      %v1409 = vld [vmem:[#allocation5 + $0x38] sm:$0xff]
      %v1410 = vld [vmem:[#allocation5 + $0x40] sm:$0xff]
      %v1411 = vld [vmem:[#allocation5 + $0x48] sm:$0xff]
      %v1412 = vld [vmem:[#allocation5 + $0x50] sm:$0xff]
      %v1413 = vld [vmem:[#allocation5 + $0x58] sm:$0xff]
      %v1414 = vld [vmem:[#allocation5 + $0x60] sm:$0xff]
      %v1415 = vld [vmem:[#allocation5 + $0x68] sm:$0xff]
      %v1416 = vld [vmem:[#allocation5 + $0x70] sm:$0xff]
      %v1417 = vld [vmem:[#allocation5 + $0x78] sm:$0xff]
      %vm1418 = vcmp.eq.f32.partialorder %v1386, -inf
      %vm1419 = vcmp.eq.f32.partialorder %v1387, -inf
      %vm1420 = vcmp.eq.f32.partialorder %v1388, -inf
      %vm1421 = vcmp.eq.f32.partialorder %v1389, -inf
      %vm1422 = vcmp.eq.f32.partialorder %v1390, -inf
      %vm1423 = vcmp.eq.f32.partialorder %v1391, -inf
      %vm1424 = vcmp.eq.f32.partialorder %v1392, -inf
      %vm1425 = vcmp.eq.f32.partialorder %v1393, -inf
      %vm1426 = vcmp.eq.f32.partialorder %v1394, -inf
      %vm1427 = vcmp.eq.f32.partialorder %v1395, -inf
      %vm1428 = vcmp.eq.f32.partialorder %v1396, -inf
      %vm1429 = vcmp.eq.f32.partialorder %v1397, -inf
      %vm1430 = vcmp.eq.f32.partialorder %v1398, -inf
      %vm1431 = vcmp.eq.f32.partialorder %v1399, -inf
      %vm1432 = vcmp.eq.f32.partialorder %v1400, -inf
      %vm1433 = vcmp.eq.f32.partialorder %v1401, -inf
      %v1434 = vmax.f32 %v1386, 0.0
      %v1435 = vmax.f32 %v1387, 0.0
      %v1436 = vmax.f32 %v1388, 0.0
      %v1437 = vmax.f32 %v1389, 0.0
      %v1438 = vmax.f32 %v1390, 0.0
      %v1439 = vmax.f32 %v1391, 0.0
      %v1440 = vmax.f32 %v1392, 0.0
      %v1441 = vmax.f32 %v1393, 0.0
      %v1442 = vmax.f32 %v1394, 0.0
      %v1443 = vmax.f32 %v1395, 0.0
      %v1444 = vmax.f32 %v1396, 0.0
      %v1445 = vmax.f32 %v1397, 0.0
      %v1446 = vmax.f32 %v1398, 0.0
      %v1447 = vmax.f32 %v1399, 0.0
      %v1448 = vmax.f32 %v1400, 0.0
      %v1449 = vmax.f32 %v1401, 0.0
      %v1450 = vadd.f32 %v1434, 1.6e-15
      %v1451 = vadd.f32 %v1435, 1.6e-15
      %v1452 = vadd.f32 %v1436, 1.6e-15
      %v1453 = vadd.f32 %v1437, 1.6e-15
      %v1454 = vadd.f32 %v1438, 1.6e-15
      %v1455 = vadd.f32 %v1439, 1.6e-15
      %v1456 = vadd.f32 %v1440, 1.6e-15
      %v1457 = vadd.f32 %v1441, 1.6e-15
      %v1458 = vadd.f32 %v1442, 1.6e-15
      %v1459 = vadd.f32 %v1443, 1.6e-15
      %v1460 = vadd.f32 %v1444, 1.6e-15
      %v1461 = vadd.f32 %v1445, 1.6e-15
      %v1462 = vadd.f32 %v1446, 1.6e-15
      %v1463 = vadd.f32 %v1447, 1.6e-15
      %v1464 = vadd.f32 %v1448, 1.6e-15
      %v1465 = vadd.f32 %v1449, 1.6e-15
      %v1466 = vrsqrt.pop %v1450
      %v1467 = vmul.f32 %v1450, %v1466
      %vm1468 = vcmp.eq.f32.partialorder %v1450, inf
      %v1469 = vsel %vm1468, %v1450, %v1467
      %vm1470 = vcmp.eq.f32.partialorder %v1450, 0.0
      %v1471 = vand.u32 %v1450, 2147483648
      %v1472 = vsel %vm1470, %v1471, %v1469
      %v1473 = vrsqrt.pop %v1451
      %v1474 = vmul.f32 %v1451, %v1473
      %vm1475 = vcmp.eq.f32.partialorder %v1451, inf
      %v1476 = vsel %vm1475, %v1451, %v1474
      %vm1477 = vcmp.eq.f32.partialorder %v1451, 0.0
      %v1478 = vand.u32 %v1451, 2147483648
      %v1479 = vsel %vm1477, %v1478, %v1476
      %v1480 = vrsqrt.pop %v1452
      %v1481 = vmul.f32 %v1452, %v1480
      %vm1482 = vcmp.eq.f32.partialorder %v1452, inf
      %v1483 = vsel %vm1482, %v1452, %v1481
      %vm1484 = vcmp.eq.f32.partialorder %v1452, 0.0
      %v1485 = vand.u32 %v1452, 2147483648
      %v1486 = vsel %vm1484, %v1485, %v1483
      %v1487 = vrsqrt.pop %v1453
      %v1488 = vmul.f32 %v1453, %v1487
      %vm1489 = vcmp.eq.f32.partialorder %v1453, inf
      %v1490 = vsel %vm1489, %v1453, %v1488
      %vm1491 = vcmp.eq.f32.partialorder %v1453, 0.0
      %v1492 = vand.u32 %v1453, 2147483648
      %v1493 = vsel %vm1491, %v1492, %v1490
      %v1494 = vrsqrt.pop %v1454
      %v1495 = vmul.f32 %v1454, %v1494
      %vm1496 = vcmp.eq.f32.partialorder %v1454, inf
      %v1497 = vsel %vm1496, %v1454, %v1495
      %vm1498 = vcmp.eq.f32.partialorder %v1454, 0.0
      %v1499 = vand.u32 %v1454, 2147483648
      %v1500 = vsel %vm1498, %v1499, %v1497
      %v1501 = vrsqrt.pop %v1455
      %v1502 = vmul.f32 %v1455, %v1501
      %vm1503 = vcmp.eq.f32.partialorder %v1455, inf
      %v1504 = vsel %vm1503, %v1455, %v1502
      %vm1505 = vcmp.eq.f32.partialorder %v1455, 0.0
      %v1506 = vand.u32 %v1455, 2147483648
      %v1507 = vsel %vm1505, %v1506, %v1504
      %v1508 = vrsqrt.pop %v1456
      %v1509 = vmul.f32 %v1456, %v1508
      %vm1510 = vcmp.eq.f32.partialorder %v1456, inf
      %v1511 = vsel %vm1510, %v1456, %v1509
      %vm1512 = vcmp.eq.f32.partialorder %v1456, 0.0
      %v1513 = vand.u32 %v1456, 2147483648
      %v1514 = vsel %vm1512, %v1513, %v1511
      %v1515 = vrsqrt.pop %v1457
      %v1516 = vmul.f32 %v1457, %v1515
      %vm1517 = vcmp.eq.f32.partialorder %v1457, inf
      %v1518 = vsel %vm1517, %v1457, %v1516
      %vm1519 = vcmp.eq.f32.partialorder %v1457, 0.0
      %v1520 = vand.u32 %v1457, 2147483648
      %v1521 = vsel %vm1519, %v1520, %v1518
      %v1522 = vrsqrt.pop %v1458
      %v1523 = vmul.f32 %v1458, %v1522
      %vm1524 = vcmp.eq.f32.partialorder %v1458, inf
      %v1525 = vsel %vm1524, %v1458, %v1523
      %vm1526 = vcmp.eq.f32.partialorder %v1458, 0.0
      %v1527 = vand.u32 %v1458, 2147483648
      %v1528 = vsel %vm1526, %v1527, %v1525
      %v1529 = vrsqrt.pop %v1459
      %v1530 = vmul.f32 %v1459, %v1529
      %vm1531 = vcmp.eq.f32.partialorder %v1459, inf
      %v1532 = vsel %vm1531, %v1459, %v1530
      %vm1533 = vcmp.eq.f32.partialorder %v1459, 0.0
      %v1534 = vand.u32 %v1459, 2147483648
      %v1535 = vsel %vm1533, %v1534, %v1532
      %v1536 = vrsqrt.pop %v1460
      %v1537 = vmul.f32 %v1460, %v1536
      %vm1538 = vcmp.eq.f32.partialorder %v1460, inf
      %v1539 = vsel %vm1538, %v1460, %v1537
      %vm1540 = vcmp.eq.f32.partialorder %v1460, 0.0
      %v1541 = vand.u32 %v1460, 2147483648
      %v1542 = vsel %vm1540, %v1541, %v1539
      %v1543 = vrsqrt.pop %v1461
      %v1544 = vmul.f32 %v1461, %v1543
      %vm1545 = vcmp.eq.f32.partialorder %v1461, inf
      %v1546 = vsel %vm1545, %v1461, %v1544
      %vm1547 = vcmp.eq.f32.partialorder %v1461, 0.0
      %v1548 = vand.u32 %v1461, 2147483648
      %v1549 = vsel %vm1547, %v1548, %v1546
      %v1550 = vrsqrt.pop %v1462
      %v1551 = vmul.f32 %v1462, %v1550
      %vm1552 = vcmp.eq.f32.partialorder %v1462, inf
      %v1553 = vsel %vm1552, %v1462, %v1551
      %vm1554 = vcmp.eq.f32.partialorder %v1462, 0.0
      %v1555 = vand.u32 %v1462, 2147483648
      %v1556 = vsel %vm1554, %v1555, %v1553
      %v1557 = vrsqrt.pop %v1463
      %v1558 = vmul.f32 %v1463, %v1557
      %vm1559 = vcmp.eq.f32.partialorder %v1463, inf
      %v1560 = vsel %vm1559, %v1463, %v1558
      %vm1561 = vcmp.eq.f32.partialorder %v1463, 0.0
      %v1562 = vand.u32 %v1463, 2147483648
      %v1563 = vsel %vm1561, %v1562, %v1560
      %v1564 = vrsqrt.pop %v1464
      %v1565 = vmul.f32 %v1464, %v1564
      %vm1566 = vcmp.eq.f32.partialorder %v1464, inf
      %v1567 = vsel %vm1566, %v1464, %v1565
      %vm1568 = vcmp.eq.f32.partialorder %v1464, 0.0
      %v1569 = vand.u32 %v1464, 2147483648
      %v1570 = vsel %vm1568, %v1569, %v1567
      %v1571 = vrsqrt.pop %v1465
      %v1572 = vmul.f32 %v1465, %v1571
      %vm1573 = vcmp.eq.f32.partialorder %v1465, inf
      %v1574 = vsel %vm1573, %v1465, %v1572
      %vm1575 = vcmp.eq.f32.partialorder %v1465, 0.0
      %v1576 = vand.u32 %v1465, 2147483648
      %v1577 = vsel %vm1575, %v1576, %v1574
      %v1578 = vsel %vm1418, 0.0, %v1472
      %v1579 = vsel %vm1419, 0.0, %v1479
      %v1580 = vsel %vm1420, 0.0, %v1486
      %v1581 = vsel %vm1421, 0.0, %v1493
      %v1582 = vsel %vm1422, 0.0, %v1500
      %v1583 = vsel %vm1423, 0.0, %v1507
      %v1584 = vsel %vm1424, 0.0, %v1514
      %v1585 = vsel %vm1425, 0.0, %v1521
      %v1586 = vsel %vm1426, 0.0, %v1528
      %v1587 = vsel %vm1427, 0.0, %v1535
      %v1588 = vsel %vm1428, 0.0, %v1542
      %v1589 = vsel %vm1429, 0.0, %v1549
      %v1590 = vsel %vm1430, 0.0, %v1556
      %v1591 = vsel %vm1431, 0.0, %v1563
      %v1592 = vsel %vm1432, 0.0, %v1570
      %v1593 = vsel %vm1433, 0.0, %v1577
      %v1594 = vmax.f32 %v1402, 0.0
      %v1595 = vmax.f32 %v1403, 0.0
      %v1596 = vmax.f32 %v1404, 0.0
      %v1597 = vmax.f32 %v1405, 0.0
      %v1598 = vmax.f32 %v1406, 0.0
      %v1599 = vmax.f32 %v1407, 0.0
      %v1600 = vmax.f32 %v1408, 0.0
      %v1601 = vmax.f32 %v1409, 0.0
      %v1602 = vmax.f32 %v1410, 0.0
      %v1603 = vmax.f32 %v1411, 0.0
      %v1604 = vmax.f32 %v1412, 0.0
      %v1605 = vmax.f32 %v1413, 0.0
      %v1606 = vmax.f32 %v1414, 0.0
      %v1607 = vmax.f32 %v1415, 0.0
      %v1608 = vmax.f32 %v1416, 0.0
      %v1609 = vmax.f32 %v1417, 0.0
      %v1610 = vadd.f32 %v1594, 1.6e-15
      %v1611 = vadd.f32 %v1595, 1.6e-15
      %v1612 = vadd.f32 %v1596, 1.6e-15
      %v1613 = vadd.f32 %v1597, 1.6e-15
      %v1614 = vadd.f32 %v1598, 1.6e-15
      %v1615 = vadd.f32 %v1599, 1.6e-15
      %v1616 = vadd.f32 %v1600, 1.6e-15
      %v1617 = vadd.f32 %v1601, 1.6e-15
      %v1618 = vadd.f32 %v1602, 1.6e-15
      %v1619 = vadd.f32 %v1603, 1.6e-15
      %v1620 = vadd.f32 %v1604, 1.6e-15
      %v1621 = vadd.f32 %v1605, 1.6e-15
      %v1622 = vadd.f32 %v1606, 1.6e-15
      %v1623 = vadd.f32 %v1607, 1.6e-15
      %v1624 = vadd.f32 %v1608, 1.6e-15
      %v1625 = vadd.f32 %v1609, 1.6e-15
      %v1626 = vrsqrt.pop %v1610
      %v1627 = vmul.f32 %v1610, %v1626
      %vm1628 = vcmp.eq.f32.partialorder %v1610, inf
      %v1629 = vsel %vm1628, %v1610, %v1627
      %vm1630 = vcmp.eq.f32.partialorder %v1610, 0.0
      %v1631 = vand.u32 %v1610, 2147483648
      %v1632 = vsel %vm1630, %v1631, %v1629
      %v1633 = vrsqrt.pop %v1611
      %v1634 = vmul.f32 %v1611, %v1633
      %vm1635 = vcmp.eq.f32.partialorder %v1611, inf
      %v1636 = vsel %vm1635, %v1611, %v1634
      %vm1637 = vcmp.eq.f32.partialorder %v1611, 0.0
      %v1638 = vand.u32 %v1611, 2147483648
      %v1639 = vsel %vm1637, %v1638, %v1636
      %v1640 = vrsqrt.pop %v1612
      %v1641 = vmul.f32 %v1612, %v1640
      %vm1642 = vcmp.eq.f32.partialorder %v1612, inf
      %v1643 = vsel %vm1642, %v1612, %v1641
      %vm1644 = vcmp.eq.f32.partialorder %v1612, 0.0
      %v1645 = vand.u32 %v1612, 2147483648
      %v1646 = vsel %vm1644, %v1645, %v1643
      %v1647 = vrsqrt.pop %v1613
      %v1648 = vmul.f32 %v1613, %v1647
      %vm1649 = vcmp.eq.f32.partialorder %v1613, inf
      %v1650 = vsel %vm1649, %v1613, %v1648
      %vm1651 = vcmp.eq.f32.partialorder %v1613, 0.0
      %v1652 = vand.u32 %v1613, 2147483648
      %v1653 = vsel %vm1651, %v1652, %v1650
      %v1654 = vrsqrt.pop %v1614
      %v1655 = vmul.f32 %v1614, %v1654
      %vm1656 = vcmp.eq.f32.partialorder %v1614, inf
      %v1657 = vsel %vm1656, %v1614, %v1655
      %vm1658 = vcmp.eq.f32.partialorder %v1614, 0.0
      %v1659 = vand.u32 %v1614, 2147483648
      %v1660 = vsel %vm1658, %v1659, %v1657
      %v1661 = vrsqrt.pop %v1615
      %v1662 = vmul.f32 %v1615, %v1661
      %vm1663 = vcmp.eq.f32.partialorder %v1615, inf
      %v1664 = vsel %vm1663, %v1615, %v1662
      %vm1665 = vcmp.eq.f32.partialorder %v1615, 0.0
      %v1666 = vand.u32 %v1615, 2147483648
      %v1667 = vsel %vm1665, %v1666, %v1664
      %v1668 = vrsqrt.pop %v1616
      %v1669 = vmul.f32 %v1616, %v1668
      %vm1670 = vcmp.eq.f32.partialorder %v1616, inf
      %v1671 = vsel %vm1670, %v1616, %v1669
      %vm1672 = vcmp.eq.f32.partialorder %v1616, 0.0
      %v1673 = vand.u32 %v1616, 2147483648
      %v1674 = vsel %vm1672, %v1673, %v1671
      %v1675 = vrsqrt.pop %v1617
      %v1676 = vmul.f32 %v1617, %v1675
      %vm1677 = vcmp.eq.f32.partialorder %v1617, inf
      %v1678 = vsel %vm1677, %v1617, %v1676
      %vm1679 = vcmp.eq.f32.partialorder %v1617, 0.0
      %v1680 = vand.u32 %v1617, 2147483648
      %v1681 = vsel %vm1679, %v1680, %v1678
      %v1682 = vrsqrt.pop %v1618
      %v1683 = vmul.f32 %v1618, %v1682
      %vm1684 = vcmp.eq.f32.partialorder %v1618, inf
      %v1685 = vsel %vm1684, %v1618, %v1683
      %vm1686 = vcmp.eq.f32.partialorder %v1618, 0.0
      %v1687 = vand.u32 %v1618, 2147483648
      %v1688 = vsel %vm1686, %v1687, %v1685
      %v1689 = vrsqrt.pop %v1619
      %v1690 = vmul.f32 %v1619, %v1689
      %vm1691 = vcmp.eq.f32.partialorder %v1619, inf
      %v1692 = vsel %vm1691, %v1619, %v1690
      %vm1693 = vcmp.eq.f32.partialorder %v1619, 0.0
      %v1694 = vand.u32 %v1619, 2147483648
      %v1695 = vsel %vm1693, %v1694, %v1692
      %v1696 = vrsqrt.pop %v1620
      %v1697 = vmul.f32 %v1620, %v1696
      %vm1698 = vcmp.eq.f32.partialorder %v1620, inf
      %v1699 = vsel %vm1698, %v1620, %v1697
      %vm1700 = vcmp.eq.f32.partialorder %v1620, 0.0
      %v1701 = vand.u32 %v1620, 2147483648
      %v1702 = vsel %vm1700, %v1701, %v1699
      %v1703 = vrsqrt.pop %v1621
      %v1704 = vmul.f32 %v1621, %v1703
      %vm1705 = vcmp.eq.f32.partialorder %v1621, inf
      %v1706 = vsel %vm1705, %v1621, %v1704
      %vm1707 = vcmp.eq.f32.partialorder %v1621, 0.0
      %v1708 = vand.u32 %v1621, 2147483648
      %v1709 = vsel %vm1707, %v1708, %v1706
      %v1710 = vrsqrt.pop %v1622
      %v1711 = vmul.f32 %v1622, %v1710
      %vm1712 = vcmp.eq.f32.partialorder %v1622, inf
      %v1713 = vsel %vm1712, %v1622, %v1711
      %vm1714 = vcmp.eq.f32.partialorder %v1622, 0.0
      %v1715 = vand.u32 %v1622, 2147483648
      %v1716 = vsel %vm1714, %v1715, %v1713
      %v1717 = vrsqrt.pop %v1623
      %v1718 = vmul.f32 %v1623, %v1717
      %vm1719 = vcmp.eq.f32.partialorder %v1623, inf
      %v1720 = vsel %vm1719, %v1623, %v1718
      %vm1721 = vcmp.eq.f32.partialorder %v1623, 0.0
      %v1722 = vand.u32 %v1623, 2147483648
      %v1723 = vsel %vm1721, %v1722, %v1720
      %v1724 = vrsqrt.pop %v1624
      %v1725 = vmul.f32 %v1624, %v1724
      %vm1726 = vcmp.eq.f32.partialorder %v1624, inf
      %v1727 = vsel %vm1726, %v1624, %v1725
      %vm1728 = vcmp.eq.f32.partialorder %v1624, 0.0
      %v1729 = vand.u32 %v1624, 2147483648
      %v1730 = vsel %vm1728, %v1729, %v1727
      %v1731 = vrsqrt.pop %v1625
      %v1732 = vmul.f32 %v1625, %v1731
      %vm1733 = vcmp.eq.f32.partialorder %v1625, inf
      %v1734 = vsel %vm1733, %v1625, %v1732
      %vm1735 = vcmp.eq.f32.partialorder %v1625, 0.0
      %v1736 = vand.u32 %v1625, 2147483648
      %v1737 = vsel %vm1735, %v1736, %v1734
      %v1738 = vsub.f32 %v1578, %v1632
      %v1739 = vsub.f32 %v1579, %v1639
      %v1740 = vsub.f32 %v1580, %v1646
      %v1741 = vsub.f32 %v1581, %v1653
      %v1742 = vsub.f32 %v1582, %v1660
      %v1743 = vsub.f32 %v1583, %v1667
      %v1744 = vsub.f32 %v1584, %v1674
      %v1745 = vsub.f32 %v1585, %v1681
      %v1746 = vsub.f32 %v1586, %v1688
      %v1747 = vsub.f32 %v1587, %v1695
      %v1748 = vsub.f32 %v1588, %v1702
      %v1749 = vsub.f32 %v1589, %v1709
      %v1750 = vsub.f32 %v1590, %v1716
      %v1751 = vsub.f32 %v1591, %v1723
      %v1752 = vsub.f32 %v1592, %v1730
      %v1753 = vsub.f32 %v1593, %v1737
      %v1754 = vmax.f32 %v1738, 0.0
      %v1755 = vmax.f32 %v1739, 0.0
      %v1756 = vmax.f32 %v1740, 0.0
      %v1757 = vmax.f32 %v1741, 0.0
      %v1758 = vmax.f32 %v1742, 0.0
      %v1759 = vmax.f32 %v1743, 0.0
      %v1760 = vmax.f32 %v1744, 0.0
      %v1761 = vmax.f32 %v1745, 0.0
      %v1762 = vmax.f32 %v1746, 0.0
      %v1763 = vmax.f32 %v1747, 0.0
      %v1764 = vmax.f32 %v1748, 0.0
      %v1765 = vmax.f32 %v1749, 0.0
      %v1766 = vmax.f32 %v1750, 0.0
      %v1767 = vmax.f32 %v1751, 0.0
      %v1768 = vmax.f32 %v1752, 0.0
      %v1769 = vmax.f32 %v1753, 0.0
      %vm1770 = vcmp.ne.f32.partialorder %v1738, %v1738
      %vm1771 = vcmp.ne.f32.partialorder %v1739, %v1739
      %vm1772 = vcmp.ne.f32.partialorder %v1740, %v1740
      %vm1773 = vcmp.ne.f32.partialorder %v1741, %v1741
      %vm1774 = vcmp.ne.f32.partialorder %v1742, %v1742
      %vm1775 = vcmp.ne.f32.partialorder %v1743, %v1743
      %vm1776 = vcmp.ne.f32.partialorder %v1744, %v1744
      %vm1777 = vcmp.ne.f32.partialorder %v1745, %v1745
      %vm1778 = vcmp.ne.f32.partialorder %v1746, %v1746
      %vm1779 = vcmp.ne.f32.partialorder %v1747, %v1747
      %vm1780 = vcmp.ne.f32.partialorder %v1748, %v1748
      %vm1781 = vcmp.ne.f32.partialorder %v1749, %v1749
      %vm1782 = vcmp.ne.f32.partialorder %v1750, %v1750
      %vm1783 = vcmp.ne.f32.partialorder %v1751, %v1751
      %vm1784 = vcmp.ne.f32.partialorder %v1752, %v1752
      %vm1785 = vcmp.ne.f32.partialorder %v1753, %v1753
      %v1786 = vadd.f32 %v1738, 0.0
      %v1787 = vadd.f32 %v1739, 0.0
      %v1788 = vadd.f32 %v1740, 0.0
      %v1789 = vadd.f32 %v1741, 0.0
      %v1790 = vadd.f32 %v1742, 0.0
      %v1791 = vadd.f32 %v1743, 0.0
      %v1792 = vadd.f32 %v1744, 0.0
      %v1793 = vadd.f32 %v1745, 0.0
      %v1794 = vadd.f32 %v1746, 0.0
      %v1795 = vadd.f32 %v1747, 0.0
      %v1796 = vadd.f32 %v1748, 0.0
      %v1797 = vadd.f32 %v1749, 0.0
      %v1798 = vadd.f32 %v1750, 0.0
      %v1799 = vadd.f32 %v1751, 0.0
      %v1800 = vadd.f32 %v1752, 0.0
      %v1801 = vadd.f32 %v1753, 0.0
      %v1802 = vand.u32 2147483647, %v1738
      %v1803 = vand.u32 2147483647, %v1739
      %v1804 = vand.u32 2147483647, %v1740
      %v1805 = vand.u32 2147483647, %v1741
      %v1806 = vand.u32 2147483647, %v1742
      %v1807 = vand.u32 2147483647, %v1743
      %v1808 = vand.u32 2147483647, %v1744
      %v1809 = vand.u32 2147483647, %v1745
      %v1810 = vand.u32 2147483647, %v1746
      %v1811 = vand.u32 2147483647, %v1747
      %v1812 = vand.u32 2147483647, %v1748
      %v1813 = vand.u32 2147483647, %v1749
      %v1814 = vand.u32 2147483647, %v1750
      %v1815 = vand.u32 2147483647, %v1751
      %v1816 = vand.u32 2147483647, %v1752
      %v1817 = vand.u32 2147483647, %v1753
      %v1818 = vsub.f32 0.0, %v1802
      %v1819 = vsub.f32 0.0, %v1803
      %v1820 = vsub.f32 0.0, %v1804
      %v1821 = vsub.f32 0.0, %v1805
      %v1822 = vsub.f32 0.0, %v1806
      %v1823 = vsub.f32 0.0, %v1807
      %v1824 = vsub.f32 0.0, %v1808
      %v1825 = vsub.f32 0.0, %v1809
      %v1826 = vsub.f32 0.0, %v1810
      %v1827 = vsub.f32 0.0, %v1811
      %v1828 = vsub.f32 0.0, %v1812
      %v1829 = vsub.f32 0.0, %v1813
      %v1830 = vsub.f32 0.0, %v1814
      %v1831 = vsub.f32 0.0, %v1815
      %v1832 = vsub.f32 0.0, %v1816
      %v1833 = vsub.f32 0.0, %v1817
      %v1834 = vmul.f32 %v1818, 1.442695
      %v1835 = vpow.pop %v1834
      %v1836 = vmul.f32 %v1819, 1.442695
      %v1837 = vpow.pop %v1836
      %v1838 = vmul.f32 %v1820, 1.442695
      %v1839 = vpow.pop %v1838
      %v1840 = vmul.f32 %v1821, 1.442695
      %v1841 = vpow.pop %v1840
      %v1842 = vmul.f32 %v1822, 1.442695
      %v1843 = vpow.pop %v1842
      %v1844 = vmul.f32 %v1823, 1.442695
      %v1845 = vpow.pop %v1844
      %v1846 = vmul.f32 %v1824, 1.442695
      %v1847 = vpow.pop %v1846
      %v1848 = vmul.f32 %v1825, 1.442695
      %v1849 = vpow.pop %v1848
      %v1850 = vmul.f32 %v1826, 1.442695
      %v1851 = vpow.pop %v1850
      %v1852 = vmul.f32 %v1827, 1.442695
      %v1853 = vpow.pop %v1852
      %v1854 = vmul.f32 %v1828, 1.442695
      %v1855 = vpow.pop %v1854
      %v1856 = vmul.f32 %v1829, 1.442695
      %v1857 = vpow.pop %v1856
      %v1858 = vmul.f32 %v1830, 1.442695
      %v1859 = vpow.pop %v1858
      %v1860 = vmul.f32 %v1831, 1.442695
      %v1861 = vpow.pop %v1860
      %v1862 = vmul.f32 %v1832, 1.442695
      %v1863 = vpow.pop %v1862
      %v1864 = vmul.f32 %v1833, 1.442695
      %v1865 = vpow.pop %v1864
      %v1866 = vadd.f32 %v1835, 1.0
      %v1867 = vlog2.pop %v1866
      %v1868 = vmul.f32 %v1867, 0.6931472
      %v1869 = vmul.f32 -0.5, %v1835
      %v1870 = vadd.f32 %v1869, 1.0
      %v1871 = vmul.f32 %v1870, %v1835
      %v1872 = vand.u32 2147483647, %v1835
      %vm1873 = vcmp.lt.f32.partialorder %v1872, 0.0004427343
      %v1874 = vsel %vm1873, %v1871, %v1868
      %v1875 = vadd.f32 %v1837, 1.0
      %v1876 = vlog2.pop %v1875
      %v1877 = vmul.f32 %v1876, 0.6931472
      %v1878 = vmul.f32 -0.5, %v1837
      %v1879 = vadd.f32 %v1878, 1.0
      %v1880 = vmul.f32 %v1879, %v1837
      %v1881 = vand.u32 2147483647, %v1837
      %vm1882 = vcmp.lt.f32.partialorder %v1881, 0.0004427343
      %v1883 = vsel %vm1882, %v1880, %v1877
      %v1884 = vadd.f32 %v1839, 1.0
      %v1885 = vlog2.pop %v1884
      %v1886 = vmul.f32 %v1885, 0.6931472
      %v1887 = vmul.f32 -0.5, %v1839
      %v1888 = vadd.f32 %v1887, 1.0
      %v1889 = vmul.f32 %v1888, %v1839
      %v1890 = vand.u32 2147483647, %v1839
      %vm1891 = vcmp.lt.f32.partialorder %v1890, 0.0004427343
      %v1892 = vsel %vm1891, %v1889, %v1886
      %v1893 = vadd.f32 %v1841, 1.0
      %v1894 = vlog2.pop %v1893
      %v1895 = vmul.f32 %v1894, 0.6931472
      %v1896 = vmul.f32 -0.5, %v1841
      %v1897 = vadd.f32 %v1896, 1.0
      %v1898 = vmul.f32 %v1897, %v1841
      %v1899 = vand.u32 2147483647, %v1841
      %vm1900 = vcmp.lt.f32.partialorder %v1899, 0.0004427343
      %v1901 = vsel %vm1900, %v1898, %v1895
      %v1902 = vadd.f32 %v1843, 1.0
      %v1903 = vlog2.pop %v1902
      %v1904 = vmul.f32 %v1903, 0.6931472
      %v1905 = vmul.f32 -0.5, %v1843
      %v1906 = vadd.f32 %v1905, 1.0
      %v1907 = vmul.f32 %v1906, %v1843
      %v1908 = vand.u32 2147483647, %v1843
      %vm1909 = vcmp.lt.f32.partialorder %v1908, 0.0004427343
      %v1910 = vsel %vm1909, %v1907, %v1904
      %v1911 = vadd.f32 %v1845, 1.0
      %v1912 = vlog2.pop %v1911
      %v1913 = vmul.f32 %v1912, 0.6931472
      %v1914 = vmul.f32 -0.5, %v1845
      %v1915 = vadd.f32 %v1914, 1.0
      %v1916 = vmul.f32 %v1915, %v1845
      %v1917 = vand.u32 2147483647, %v1845
      %vm1918 = vcmp.lt.f32.partialorder %v1917, 0.0004427343
      %v1919 = vsel %vm1918, %v1916, %v1913
      %v1920 = vadd.f32 %v1847, 1.0
      %v1921 = vlog2.pop %v1920
      %v1922 = vmul.f32 %v1921, 0.6931472
      %v1923 = vmul.f32 -0.5, %v1847
      %v1924 = vadd.f32 %v1923, 1.0
      %v1925 = vmul.f32 %v1924, %v1847
      %v1926 = vand.u32 2147483647, %v1847
      %vm1927 = vcmp.lt.f32.partialorder %v1926, 0.0004427343
      %v1928 = vsel %vm1927, %v1925, %v1922
      %v1929 = vadd.f32 %v1849, 1.0
      %v1930 = vlog2.pop %v1929
      %v1931 = vmul.f32 %v1930, 0.6931472
      %v1932 = vmul.f32 -0.5, %v1849
      %v1933 = vadd.f32 %v1932, 1.0
      %v1934 = vmul.f32 %v1933, %v1849
      %v1935 = vand.u32 2147483647, %v1849
      %vm1936 = vcmp.lt.f32.partialorder %v1935, 0.0004427343
      %v1937 = vsel %vm1936, %v1934, %v1931
      %v1938 = vadd.f32 %v1851, 1.0
      %v1939 = vlog2.pop %v1938
      %v1940 = vmul.f32 %v1939, 0.6931472
      %v1941 = vmul.f32 -0.5, %v1851
      %v1942 = vadd.f32 %v1941, 1.0
      %v1943 = vmul.f32 %v1942, %v1851
      %v1944 = vand.u32 2147483647, %v1851
      %vm1945 = vcmp.lt.f32.partialorder %v1944, 0.0004427343
      %v1946 = vsel %vm1945, %v1943, %v1940
      %v1947 = vadd.f32 %v1853, 1.0
      %v1948 = vlog2.pop %v1947
      %v1949 = vmul.f32 %v1948, 0.6931472
      %v1950 = vmul.f32 -0.5, %v1853
      %v1951 = vadd.f32 %v1950, 1.0
      %v1952 = vmul.f32 %v1951, %v1853
      %v1953 = vand.u32 2147483647, %v1853
      %vm1954 = vcmp.lt.f32.partialorder %v1953, 0.0004427343
      %v1955 = vsel %vm1954, %v1952, %v1949
      %v1956 = vadd.f32 %v1855, 1.0
      %v1957 = vlog2.pop %v1956
      %v1958 = vmul.f32 %v1957, 0.6931472
      %v1959 = vmul.f32 -0.5, %v1855
      %v1960 = vadd.f32 %v1959, 1.0
      %v1961 = vmul.f32 %v1960, %v1855
      %v1962 = vand.u32 2147483647, %v1855
      %vm1963 = vcmp.lt.f32.partialorder %v1962, 0.0004427343
      %v1964 = vsel %vm1963, %v1961, %v1958
      %v1965 = vadd.f32 %v1857, 1.0
      %v1966 = vlog2.pop %v1965
      %v1967 = vmul.f32 %v1966, 0.6931472
      %v1968 = vmul.f32 -0.5, %v1857
      %v1969 = vadd.f32 %v1968, 1.0
      %v1970 = vmul.f32 %v1969, %v1857
      %v1971 = vand.u32 2147483647, %v1857
      %vm1972 = vcmp.lt.f32.partialorder %v1971, 0.0004427343
      %v1973 = vsel %vm1972, %v1970, %v1967
      %v1974 = vadd.f32 %v1859, 1.0
      %v1975 = vlog2.pop %v1974
      %v1976 = vmul.f32 %v1975, 0.6931472
      %v1977 = vmul.f32 -0.5, %v1859
      %v1978 = vadd.f32 %v1977, 1.0
      %v1979 = vmul.f32 %v1978, %v1859
      %v1980 = vand.u32 2147483647, %v1859
      %vm1981 = vcmp.lt.f32.partialorder %v1980, 0.0004427343
      %v1982 = vsel %vm1981, %v1979, %v1976
      %v1983 = vadd.f32 %v1861, 1.0
      %v1984 = vlog2.pop %v1983
      %v1985 = vmul.f32 %v1984, 0.6931472
      %v1986 = vmul.f32 -0.5, %v1861
      %v1987 = vadd.f32 %v1986, 1.0
      %v1988 = vmul.f32 %v1987, %v1861
      %v1989 = vand.u32 2147483647, %v1861
      %vm1990 = vcmp.lt.f32.partialorder %v1989, 0.0004427343
      %v1991 = vsel %vm1990, %v1988, %v1985
      %v1992 = vadd.f32 %v1863, 1.0
      %v1993 = vlog2.pop %v1992
      %v1994 = vmul.f32 %v1993, 0.6931472
      %v1995 = vmul.f32 -0.5, %v1863
      %v1996 = vadd.f32 %v1995, 1.0
      %v1997 = vmul.f32 %v1996, %v1863
      %v1998 = vand.u32 2147483647, %v1863
      %vm1999 = vcmp.lt.f32.partialorder %v1998, 0.0004427343
      %v2000 = vsel %vm1999, %v1997, %v1994
      %v2001 = vadd.f32 %v1865, 1.0
      %v2002 = vlog2.pop %v2001
      %v2003 = vmul.f32 %v2002, 0.6931472
      %v2004 = vmul.f32 -0.5, %v1865
      %v2005 = vadd.f32 %v2004, 1.0
      %v2006 = vmul.f32 %v2005, %v1865
      %v2007 = vand.u32 2147483647, %v1865
      %vm2008 = vcmp.lt.f32.partialorder %v2007, 0.0004427343
      %v2009 = vsel %vm2008, %v2006, %v2003
      %v2010 = vadd.f32 %v1754, %v1874
      %v2011 = vadd.f32 %v1755, %v1883
      %v2012 = vadd.f32 %v1756, %v1892
      %v2013 = vadd.f32 %v1757, %v1901
      %v2014 = vadd.f32 %v1758, %v1910
      %v2015 = vadd.f32 %v1759, %v1919
      %v2016 = vadd.f32 %v1760, %v1928
      %v2017 = vadd.f32 %v1761, %v1937
      %v2018 = vadd.f32 %v1762, %v1946
      %v2019 = vadd.f32 %v1763, %v1955
      %v2020 = vadd.f32 %v1764, %v1964
      %v2021 = vadd.f32 %v1765, %v1973
      %v2022 = vadd.f32 %v1766, %v1982
      %v2023 = vadd.f32 %v1767, %v1991
      %v2024 = vadd.f32 %v1768, %v2000
      %v2025 = vadd.f32 %v1769, %v2009
      %v2026 = vsel %vm1770, %v1786, %v2010
      %v2027 = vsel %vm1771, %v1787, %v2011
      %v2028 = vsel %vm1772, %v1788, %v2012
      %v2029 = vsel %vm1773, %v1789, %v2013
      %v2030 = vsel %vm1774, %v1790, %v2014
      %v2031 = vsel %vm1775, %v1791, %v2015
      %v2032 = vsel %vm1776, %v1792, %v2016
      %v2033 = vsel %vm1777, %v1793, %v2017
      %v2034 = vsel %vm1778, %v1794, %v2018
      %v2035 = vsel %vm1779, %v1795, %v2019
      %v2036 = vsel %vm1780, %v1796, %v2020
      %v2037 = vsel %vm1781, %v1797, %v2021
      %v2038 = vsel %vm1782, %v1798, %v2022
      %v2039 = vsel %vm1783, %v1799, %v2023
      %v2040 = vsel %vm1784, %v1800, %v2024
      %v2041 = vsel %vm1785, %v1801, %v2025
      %2042 = vxpose.xlu0.b32.start [1/16] %v2026, 128
      %2043 = vxpose.xlu0.b32.cont [2/16] %v2027, 128
      %2044 = vxpose.xlu0.b32.cont [3/16] %v2028, 128
      %2045 = vxpose.xlu0.b32.cont [4/16] %v2029, 128
      %2046 = vxpose.xlu0.b32.cont [5/16] %v2030, 128
      %2047 = vxpose.xlu0.b32.cont [6/16] %v2031, 128
      %2048 = vxpose.xlu0.b32.cont [7/16] %v2032, 128
      %2049 = vxpose.xlu0.b32.cont [8/16] %v2033, 128
      %2050 = vxpose.xlu0.b32.cont [9/16] %v2034, 128
      %2051 = vxpose.xlu0.b32.cont [10/16] %v2035, 128
      %2052 = vxpose.xlu0.b32.cont [11/16] %v2036, 128
      %2053 = vxpose.xlu0.b32.cont [12/16] %v2037, 128
      %2054 = vxpose.xlu0.b32.cont [13/16] %v2038, 128
      %2055 = vxpose.xlu0.b32.cont [14/16] %v2039, 128
      %2056 = vxpose.xlu0.b32.cont [15/16] %v2040, 128
      %2057 = vxpose.xlu0.b32.end [16/16] %v2041, 128
      %v2058 = vpop.trf.xlu0
      %v2059 = vpop.trf.xlu0
      %v2060 = vpop.trf.xlu0
      %v2061 = vpop.trf.xlu0
      %v2062 = vpop.trf.xlu0
      %v2063 = vpop.trf.xlu0
      %v2064 = vpop.trf.xlu0
      %v2065 = vpop.trf.xlu0
      %v2066 = vpop.trf.xlu0
      %v2067 = vpop.trf.xlu0
      %v2068 = vpop.trf.xlu0
      %v2069 = vpop.trf.xlu0
      %v2070 = vpop.trf.xlu0
      %v2071 = vpop.trf.xlu0
      %v2072 = vpop.trf.xlu0
      %v2073 = vpop.trf.xlu0
      %2074 = vst [vmem:[#allocation6] sm:$0x1] %v2058
    $region53: #{tpu_custom_call.1} parent=1 // pred_fallthru
      _
    // Predicated region
    $region54: #{tpu_custom_call.1} parent=1 // pred_check
      _
    $region55: #{tpu_custom_call.1} parent=1 // pred_check_branch
      %2076 = sbr.rel (0) target = $region57
    $region56: #{tpu_custom_call.1} parent=1 // pred_region
      %s2078 = ssub.s32 16, 16
      %2079 = vsyncadd [#allocation7], %s2078
      %s2081 = sshll.u32 [#allocation6], 4
      %s2082 = int_to_ptr.vmem [resolvable:$true] %s2081
      %2084 = dma.vmem_to_hbm [thread:$0]  %s2082, 16, %s11, [#allocation7]
    $region57: #{tpu_custom_call.1} parent=1 // pred_fallthru
      _
    // Predicated region
    $region58: #{tpu_custom_call.1} parent=1 // pred_check
      _
    $region59: #{tpu_custom_call.1} parent=1 // pred_check_branch
      %2086 = sbr.rel (0) target = $region61
    $region60: #{tpu_custom_call.1} parent=1 // pred_region
      _
    $region61: #{tpu_custom_call.1} parent=1 // pred_fallthru
      _
    // Predicated region
    $region62: #{tpu_custom_call.1} parent=1 // pred_check
      _
    $region63: #{tpu_custom_call.1} parent=1 // pred_check_branch
      %2088 = sbr.rel (0) target = $region65
    $region64: #{tpu_custom_call.1} parent=1 // pred_region
      %2089 = dma.done [#allocation7], 16
    $region65: #{tpu_custom_call.1} parent=1 // pred_fallthru
      _
    // Predicated region
    $region66: #{tpu_custom_call.1} parent=1 // pred_check
      _
    $region67: #{tpu_custom_call.1} parent=1 // pred_check_branch
      %2091 = sbr.rel (0) target = $region69
    $region68: #{tpu_custom_call.1} parent=1 // pred_region
      _
    $region69: #{tpu_custom_call.1} parent=1 // pred_fallthru
      _
    %2092 = vsyncpa [#allocation7], 1

</llo_original>
